<compile_context>
chip_gen: v6e
topology: v6e:2x2x1
jax: 0.10.0
libtpu: 0.0.40
codegen_flags: <defaults>
</compile_context>

<pallas_src>
import functools
import math

import jax
import jax.numpy as jnp
from jax.experimental import pallas as pl
from jax.experimental.pallas import tpu as pltpu


def _round_up(x, m):
    return ((x + m - 1) // m) * m


def mha_attn_kernel(q_ref, k_ref, v_ref, wo_ref, b_ref, o_ref, stage_ref,
                    *, num_heads, head_dim):
    """One (batch, q-tile) grid step.

    q_ref    : (1, nh, TQ, hd) bf16   query rows (pre-scaled by 1/sqrt(hd))
    k_ref    : (1, nh, S,  hd) bf16   keys   (constant across q tiles)
    v_ref    : (1, nh, S,  hd) bf16   values (constant across q tiles)
    wo_ref   : (C, C)          bf16   pre-transposed output weight
    b_ref    : (1, C)          f32    output bias
    o_ref    : (1, TQ, C)      f32
    stage_ref: (TQ, C)         bf16   VMEM staging for the fused out-projection
    """
    q = q_ref[0]                                               # (nh, TQ, hd)
    k = k_ref[0]                                               # (nh, S,  hd)
    v = v_ref[0]                                               # (nh, S,  hd)

    # Batched-over-heads q @ k^T: head dim contracted directly (no k^T copy),
    # no per-head lane-narrow slice extracts.
    s = jnp.einsum('hqd,hkd->hqk', q, k,
                   preferred_element_type=jnp.float32)         # (nh, TQ, S) f32

    # Numerically-stable softmax; exp stays f32 (v5e has no bf16 EUP).
    s = s - jnp.max(s, axis=-1, keepdims=True)
    p = jnp.exp(s)
    inv = pl.reciprocal(jnp.sum(p, axis=-1, keepdims=True),
                        approx=False)                          # (nh, TQ, 1) EUP

    # Unnormalized p @ v (batched over heads), normalize the small result.
    o = jnp.einsum('hqk,hkd->hqd', p.astype(jnp.bfloat16), v,
                   preferred_element_type=jnp.float32) * inv   # (nh, TQ, hd)

    # Stage heads into (TQ, C) bf16 so the out-projection contracts the full
    # C depth in ONE matmul (instead of num_heads shallow hd-deep matmuls).
    for h in range(num_heads):
        lo = h * head_dim
        stage_ref[:, lo:lo + head_dim] = o[h].astype(jnp.bfloat16)

    out = jnp.dot(stage_ref[...], wo_ref[...],
                  preferred_element_type=jnp.float32)          # (TQ, C) f32
    o_ref[0] = (out + b_ref[...]).astype(o_ref.dtype)


def mha_forward(x_nchw, wqkv, wout, bout, num_heads, *, max_q_tile=512):
    N, C, H, W = x_nchw.shape
    assert C % num_heads == 0
    head_dim = C // num_heads
    S = H * W
    scale = 1.0 / math.sqrt(head_dim)

    # NCHW -> (N, S, C), same element order as torch permute(0,2,3,1).reshape
    x = jnp.transpose(x_nchw, (0, 2, 3, 1)).reshape(N, S, C).astype(jnp.float32)

    # Q/K/V projections as plain XLA matmuls (hoisted out of the kernel).
    # Scale is folded into Q once, here.
    wq, wk, wv = jnp.split(wqkv, 3, axis=0)                    # each (C, C)
    q = (x @ wq.T) * scale
    k = x @ wk.T
    v = x @ wv.T

    def split_heads(t):
        t = t.reshape(N, S, num_heads, head_dim)
        return jnp.transpose(t, (0, 2, 1, 3)).astype(jnp.bfloat16)  # (N,nh,S,hd)

    qh, kh, vh = split_heads(q), split_heads(k), split_heads(v)

    # Query-row tiling (bounds per-step score VMEM independent of S) with
    # padding so tiles stay sublane-aligned for odd spatial sizes.
    if S <= max_q_tile:
        s_padq = _round_up(S, 8)
        tq = s_padq
    else:
        tq = max_q_tile
        s_padq = _round_up(S, tq)
    num_q_tiles = s_padq // tq
    if s_padq != S:
        # zero-padded query rows produce finite garbage rows, sliced off below
        qh = jnp.pad(qh, ((0, 0), (0, 0), (0, s_padq - S), (0, 0)))

    wo_t = jnp.transpose(wout).astype(jnp.bfloat16)            # (C, C)
    bias = bout.reshape(1, C).astype(jnp.float32)

    # Per-generation scoped-VMEM budget (v7x has only 64 MiB physical VMEM).
    try:
        vmem_cap = int(pltpu.get_tpu_info().vmem_capacity_bytes)
    except Exception:
        vmem_cap = 64 * 1024 * 1024
    vmem_limit = max(32 * 1024 * 1024,
                     min(100 * 1024 * 1024, (vmem_cap * 3) // 4))

    kernel = functools.partial(mha_attn_kernel,
                               num_heads=num_heads, head_dim=head_dim)

    out = pl.pallas_call(
        kernel,
        out_shape=jax.ShapeDtypeStruct((N, s_padq, C), jnp.float32),
        grid=(N, num_q_tiles),
        in_specs=[
            # q tile for this grid step
            pl.BlockSpec((1, num_heads, tq, head_dim), lambda n, i: (n, 0, i, 0)),
            # K/V: constant index across the q-tile axis -> fetched once per n
            pl.BlockSpec((1, num_heads, S, head_dim), lambda n, i: (n, 0, 0, 0)),
            pl.BlockSpec((1, num_heads, S, head_dim), lambda n, i: (n, 0, 0, 0)),
            pl.BlockSpec((C, C), lambda n, i: (0, 0)),          # Wout^T (shared)
            pl.BlockSpec((1, C), lambda n, i: (0, 0)),          # bias   (shared)
        ],
        out_specs=pl.BlockSpec((1, tq, C), lambda n, i: (n, i, 0)),
        scratch_shapes=[
            pltpu.VMEM((tq, C), jnp.bfloat16),   # head-staging for out-proj
        ],
        compiler_params=pltpu.CompilerParams(
            # no cross-step dependency remains -> both axes are parallel
            # (megacore can shard either axis on v7x).
            dimension_semantics=("parallel", "parallel"),
            vmem_limit_bytes=vmem_limit,
        ),
    )(qh, kh, vh, wo_t, bias)

    out = out[:, :S, :]
    # (N, S, C) -> NHWC -> NCHW
    return jnp.transpose(out.reshape(N, H, W, C), (0, 3, 1, 2))


def mha_reference(x_nchw, wqkv, wout, bout, num_heads):
    """Pure-JAX f32 replica of the PyTorch forward for verification."""
    N, C, H, W = x_nchw.shape
    head_dim = C // num_heads
    S = H * W
    x = jnp.transpose(x_nchw, (0, 2, 3, 1)).reshape(N, S, C)
    qkv = x @ wqkv.T                                            # (N, S, 3C)
    qkv = qkv.reshape(N, S, 3, num_heads, head_dim)
    qkv = jnp.transpose(qkv, (2, 0, 3, 1, 4))                   # (3, N, h, S, hd)
    q, k, v = qkv[0], qkv[1], qkv[2]
    attn = jnp.einsum('nhsd,nhtd->nhst', q, k) / math.sqrt(head_dim)
    attn = jax.nn.softmax(attn, axis=-1)
    o = jnp.einsum('nhst,nhtd->nhsd', attn, v)                  # (N, h, S, hd)
    o = jnp.transpose(o, (0, 2, 1, 3)).reshape(N, H, W, C)
    o = o @ wout.T + bout
    return jnp.transpose(o, (0, 3, 1, 2))


if __name__ == "__main__":
    # small shapes consistent with the module
    N, C, H, W = 2, 32, 8, 8
    num_heads = 4

    key = jax.random.PRNGKey(0)
    kx, kqkv, kwo, kbo = jax.random.split(key, 4)

    x = jax.random.normal(kx, (N, C, H, W), dtype=jnp.float32)
    # deterministic parameter init (torch.nn.Linear uniform-ish scale)
    bound = 1.0 / math.sqrt(C)
    wqkv = jax.random.uniform(kqkv, (3 * C, C), jnp.float32, -bound, bound)
    wout = jax.random.uniform(kwo, (C, C), jnp.float32, -bound, bound)
    bout = jax.random.uniform(kbo, (C,), jnp.float32, -bound, bound)

    y = mha_forward(x, wqkv, wout, bout, num_heads)
    y = jax.block_until_ready(y)

    y_ref = mha_reference(x, wqkv, wout, bout, num_heads)
    assert y.shape == (N, C, H, W)
    # tolerance accounts for bf16 MXU operands vs. the pure-f32 reference
    assert jnp.allclose(y, y_ref, atol=2e-2, rtol=2e-2), "mismatch vs reference"

    print("KERNEL_OK")
</pallas_src>

<mosaic_0001>
module attributes {stable_mosaic.version = 11 : i64} {
  func.func @mha_attn_kernel(%arg0: i32, %arg1: i32, %arg2: memref<1x4x64x8xbf16, #tpu.memory_space<vmem>>, %arg3: memref<1x4x64x8xbf16, #tpu.memory_space<vmem>>, %arg4: memref<1x4x64x8xbf16, #tpu.memory_space<vmem>>, %arg5: memref<32x32xbf16, #tpu.memory_space<vmem>>, %arg6: memref<1x32xf32, #tpu.memory_space<vmem>>, %arg7: memref<1x64x32xf32, #tpu.memory_space<vmem>>, %arg8: memref<64x32xbf16, #tpu.memory_space<vmem>>) attributes {dimension_semantics = [#tpu.dimension_semantics<parallel>, #tpu.dimension_semantics<parallel>], iteration_bounds = array<i64: 2, 1>, scalar_prefetch = 0 : i64, scratch_operands = 1 : i64, tpu.core_type = #tpu.core_type<tc>, window_params = [{transform_indices = @transform_0, window_bounds = array<i64: 1, 4, 64, 8>}, {transform_indices = @transform_1, window_bounds = array<i64: 1, 4, 64, 8>}, {transform_indices = @transform_2, window_bounds = array<i64: 1, 4, 64, 8>}, {pipeline_mode = #tpu.pipeline_mode<synchronous>, transform_indices = @transform_3, window_bounds = array<i64: 32, 32>}, {pipeline_mode = #tpu.pipeline_mode<synchronous>, transform_indices = @transform_4, window_bounds = array<i64: 1, 32>}, {transform_indices = @transform_5, window_bounds = array<i64: 1, 64, 32>}]} {
    %c0 = arith.constant 0 : index
    %c0_0 = arith.constant 0 : index
    %c0_1 = arith.constant 0 : index
    %c0_2 = arith.constant 0 : index
    %0 = vector.load %arg2[%c0, %c0_0, %c0_1, %c0_2] : memref<1x4x64x8xbf16, #tpu.memory_space<vmem>>, vector<1x4x64x8xbf16>
    %1 = vector.shape_cast %0 : vector<1x4x64x8xbf16> to vector<4x64x8xbf16>
    %c0_3 = arith.constant 0 : index
    %c0_4 = arith.constant 0 : index
    %c0_5 = arith.constant 0 : index
    %c0_6 = arith.constant 0 : index
    %2 = vector.load %arg3[%c0_3, %c0_4, %c0_5, %c0_6] : memref<1x4x64x8xbf16, #tpu.memory_space<vmem>>, vector<1x4x64x8xbf16>
    %3 = vector.shape_cast %2 : vector<1x4x64x8xbf16> to vector<4x64x8xbf16>
    %c0_7 = arith.constant 0 : index
    %c0_8 = arith.constant 0 : index
    %c0_9 = arith.constant 0 : index
    %c0_10 = arith.constant 0 : index
    %4 = vector.load %arg4[%c0_7, %c0_8, %c0_9, %c0_10] : memref<1x4x64x8xbf16, #tpu.memory_space<vmem>>, vector<1x4x64x8xbf16>
    %5 = vector.shape_cast %4 : vector<1x4x64x8xbf16> to vector<4x64x8xbf16>
    "tpu.trace_start"() <{level = 10 : i32, message = "hqd,hkd->hqk"}> : () -> ()
    %cst = arith.constant dense<0.000000e+00> : vector<4x64x64xf32>
    %6 = tpu.matmul %1, %3, %cst {dimension_numbers = #tpu.dot_dimension_numbers<[2], [2], [1], [1], [0, 0, 0, 1, 1, 1], [0], [0]>} : vector<4x64x8xbf16>, vector<4x64x8xbf16>, vector<4x64x64xf32> -> vector<4x64x64xf32>
    "tpu.trace_stop"() : () -> ()
    %cst_11 = arith.constant dense<0xFF800000> : vector<4x64xf32>
    %7 = vector.multi_reduction <maximumf>, %6, %cst_11 [2] : vector<4x64x64xf32> to vector<4x64xf32>
    %8 = vector.shape_cast %7 : vector<4x64xf32> to vector<4x64x1xf32>
    %9 = vector.broadcast %8 : vector<4x64x1xf32> to vector<4x64x64xf32>
    %10 = arith.subf %6, %9 : vector<4x64x64xf32>
    %11 = math.exp %10 : vector<4x64x64xf32>
    %cst_12 = arith.constant dense<0.000000e+00> : vector<4x64xf32>
    %12 = vector.multi_reduction <add>, %11, %cst_12 [2] : vector<4x64x64xf32> to vector<4x64xf32>
    %13 = vector.shape_cast %12 : vector<4x64xf32> to vector<4x64x1xf32>
    %14 = tpu.reciprocal %13 : vector<4x64x1xf32> -> vector<4x64x1xf32>
    %15 = arith.truncf %11 : vector<4x64x64xf32> to vector<4x64x64xbf16>
    "tpu.trace_start"() <{level = 10 : i32, message = "hqk,hkd->hqd"}> : () -> ()
    %cst_13 = arith.constant dense<0.000000e+00> : vector<4x64x8xf32>
    %16 = tpu.matmul %15, %5, %cst_13 {dimension_numbers = #tpu.dot_dimension_numbers<[2], [1], [1], [2], [0, 0, 0, 1, 1, 2], [0], [0]>} : vector<4x64x64xbf16>, vector<4x64x8xbf16>, vector<4x64x8xf32> -> vector<4x64x8xf32>
    "tpu.trace_stop"() : () -> ()
    %17 = vector.broadcast %14 : vector<4x64x1xf32> to vector<4x64x8xf32>
    %18 = arith.mulf %16, %17 : vector<4x64x8xf32>
    %19 = vector.extract_strided_slice %18 {offsets = [0, 0, 0], sizes = [1, 64, 8], strides = [1, 1, 1]} : vector<4x64x8xf32> to vector<1x64x8xf32>
    %20 = vector.shape_cast %19 : vector<1x64x8xf32> to vector<64x8xf32>
    %21 = arith.truncf %20 : vector<64x8xf32> to vector<64x8xbf16>
    %c0_14 = arith.constant 0 : index
    %c0_15 = arith.constant 0 : index
    %22 = vector.load %arg8[%c0_14, %c0_15] : memref<64x32xbf16, #tpu.memory_space<vmem>>, vector<64x8xbf16>
    tpu.vector_store %arg8[%c0_14, %c0_15], %21 {strides = array<i32>} : memref<64x32xbf16, #tpu.memory_space<vmem>>, vector<64x8xbf16>,
    %23 = vector.extract_strided_slice %18 {offsets = [1, 0, 0], sizes = [1, 64, 8], strides = [1, 1, 1]} : vector<4x64x8xf32> to vector<1x64x8xf32>
    %24 = vector.shape_cast %23 : vector<1x64x8xf32> to vector<64x8xf32>
    %25 = arith.truncf %24 : vector<64x8xf32> to vector<64x8xbf16>
    %c0_16 = arith.constant 0 : index
    %c8 = arith.constant 8 : index
    %26 = vector.load %arg8[%c0_16, %c8] : memref<64x32xbf16, #tpu.memory_space<vmem>>, vector<64x8xbf16>
    tpu.vector_store %arg8[%c0_16, %c8], %25 {strides = array<i32>} : memref<64x32xbf16, #tpu.memory_space<vmem>>, vector<64x8xbf16>,
    %27 = vector.extract_strided_slice %18 {offsets = [2, 0, 0], sizes = [1, 64, 8], strides = [1, 1, 1]} : vector<4x64x8xf32> to vector<1x64x8xf32>
    %28 = vector.shape_cast %27 : vector<1x64x8xf32> to vector<64x8xf32>
    %29 = arith.truncf %28 : vector<64x8xf32> to vector<64x8xbf16>
    %c0_17 = arith.constant 0 : index
    %c16 = arith.constant 16 : index
    %30 = vector.load %arg8[%c0_17, %c16] : memref<64x32xbf16, #tpu.memory_space<vmem>>, vector<64x8xbf16>
    tpu.vector_store %arg8[%c0_17, %c16], %29 {strides = array<i32>} : memref<64x32xbf16, #tpu.memory_space<vmem>>, vector<64x8xbf16>,
    %31 = vector.extract_strided_slice %18 {offsets = [3, 0, 0], sizes = [1, 64, 8], strides = [1, 1, 1]} : vector<4x64x8xf32> to vector<1x64x8xf32>
    %32 = vector.shape_cast %31 : vector<1x64x8xf32> to vector<64x8xf32>
    %33 = arith.truncf %32 : vector<64x8xf32> to vector<64x8xbf16>
    %c0_18 = arith.constant 0 : index
    %c24 = arith.constant 24 : index
    %34 = vector.load %arg8[%c0_18, %c24] : memref<64x32xbf16, #tpu.memory_space<vmem>>, vector<64x8xbf16>
    tpu.vector_store %arg8[%c0_18, %c24], %33 {strides = array<i32>} : memref<64x32xbf16, #tpu.memory_space<vmem>>, vector<64x8xbf16>,
    %c0_19 = arith.constant 0 : index
    %c0_20 = arith.constant 0 : index
    %35 = vector.load %arg8[%c0_19, %c0_20] : memref<64x32xbf16, #tpu.memory_space<vmem>>, vector<64x32xbf16>
    %c0_21 = arith.constant 0 : index
    %c0_22 = arith.constant 0 : index
    %36 = vector.load %arg5[%c0_21, %c0_22] : memref<32x32xbf16, #tpu.memory_space<vmem>>, vector<32x32xbf16>
    %cst_23 = arith.constant dense<0.000000e+00> : vector<64x32xf32>
    %37 = tpu.matmul %35, %36, %cst_23 {dimension_numbers = #tpu.dot_dimension_numbers<[1], [0], [0], [1], [0, 0, 1, 1], [], []>} : vector<64x32xbf16>, vector<32x32xbf16>, vector<64x32xf32> -> vector<64x32xf32>
    %c0_24 = arith.constant 0 : index
    %c0_25 = arith.constant 0 : index
    %38 = vector.load %arg6[%c0_24, %c0_25] : memref<1x32xf32, #tpu.memory_space<vmem>>, vector<1x32xf32>
    %39 = vector.broadcast %38 : vector<1x32xf32> to vector<64x32xf32>
    %40 = arith.addf %37, %39 : vector<64x32xf32>
    %c0_26 = arith.constant 0 : index
    %c0_27 = arith.constant 0 : index
    %c0_28 = arith.constant 0 : index
    %41 = vector.load %arg7[%c0_26, %c0_27, %c0_28] : memref<1x64x32xf32, #tpu.memory_space<vmem>>, vector<1x64x32xf32>
    %42 = vector.shape_cast %41 : vector<1x64x32xf32> to vector<64x32xf32>
    %43 = vector.shape_cast %40 : vector<64x32xf32> to vector<1x64x32xf32>
    tpu.vector_store %arg7[%c0_26, %c0_27, %c0_28], %43 {strides = array<i32>} : memref<1x64x32xf32, #tpu.memory_space<vmem>>, vector<1x64x32xf32>,
    return
  }
  func.func @transform_0(%arg0: i32, %arg1: i32) -> (i32, i32, i32, i32) {
    %c0_i32 = arith.constant 0 : i32
    %c0_i32_0 = arith.constant 0 : i32
    %c0_i32_1 = arith.constant 0 : i32
    return %arg0, %c0_i32, %arg1, %c0_i32_0 : i32, i32, i32, i32
  }
  func.func @transform_1(%arg0: i32, %arg1: i32) -> (i32, i32, i32, i32) {
    %c0_i32 = arith.constant 0 : i32
    %c0_i32_0 = arith.constant 0 : i32
    %c0_i32_1 = arith.constant 0 : i32
    %c0_i32_2 = arith.constant 0 : i32
    return %arg0, %c0_i32, %c0_i32_0, %c0_i32_1 : i32, i32, i32, i32
  }
  func.func @transform_2(%arg0: i32, %arg1: i32) -> (i32, i32, i32, i32) {
    %c0_i32 = arith.constant 0 : i32
    %c0_i32_0 = arith.constant 0 : i32
    %c0_i32_1 = arith.constant 0 : i32
    %c0_i32_2 = arith.constant 0 : i32
    return %arg0, %c0_i32, %c0_i32_0, %c0_i32_1 : i32, i32, i32, i32
  }
  func.func @transform_3(%arg0: i32, %arg1: i32) -> (i32, i32) {
    %c0_i32 = arith.constant 0 : i32
    %c0_i32_0 = arith.constant 0 : i32
    %c0_i32_1 = arith.constant 0 : i32
    return %c0_i32, %c0_i32_0 : i32, i32
  }
  func.func @transform_4(%arg0: i32, %arg1: i32) -> (i32, i32) {
    %c0_i32 = arith.constant 0 : i32
    %c0_i32_0 = arith.constant 0 : i32
    %c0_i32_1 = arith.constant 0 : i32
    return %c0_i32, %c0_i32_0 : i32, i32
  }
  func.func @transform_5(%arg0: i32, %arg1: i32) -> (i32, i32, i32) {
    %c0_i32 = arith.constant 0 : i32
    %c0_i32_0 = arith.constant 0 : i32
    return %arg0, %arg1, %c0_i32 : i32, i32, i32
  }
}

</mosaic_0001>

<llo_original>
// kernel: tpu_custom_call.1
$region0: #{tpu_custom_call.1}
  #allocation0 [shape = 'u32[]', space=smem, size = 0x4, offset = 0x4, fixed_abs, tag = 'smem constant byte address 0x4 - core index']
  #allocation1 [shape = 'u32[144,128]{1,0:T(1,128)}', space=vmem, size = 0x12000, scoped, tag = 'internal scratch']
  #allocation2 [shape = 'bf16[64,32]{1,0:T(8,128)(2,1)}', space=vmem, size = 0x4000, scoped, tag = 'scratch operand']
  %s0 = inlined_call_operand.vmem [shape: bf16[2,4,64,8], index: 0, kind: input, shape index: {}]
  %s1 = inlined_call_operand.vmem [shape: bf16[2,4,64,8], index: 1, kind: input, shape index: {}]
  %s2 = inlined_call_operand.vmem [shape: bf16[2,4,64,8], index: 2, kind: input, shape index: {}]
  %s3 = inlined_call_operand.vmem [shape: bf16[32,32], index: 3, kind: input, shape index: {}]
  %s4 = inlined_call_operand.vmem [shape: f32[1,32], index: 4, kind: input, shape index: {}]
  %s5 = inlined_call_operand.vmem [shape: f32[2,64,32], index: 5, kind: output, shape index: {}]
  %s6 = sld [smem:[#allocation0]]
  $region53: #{tpu_custom_call.1} parent=0
    _
  %s8 = ssub.s32 1, %s6
  %s9 = scalar_select 0, %s8, %s6
  loop: start=0, step=1, limit=4
  $region2: #{tpu_custom_call.1} parent=0 // loop_pre_header
    _
  $region3: #{tpu_custom_call.1} parent=0 // loop_header
    %s11 = sphi 0, %s15
    %p12 = scmp.ge.s32.totalorder %s11, 4
    %s18 = sphi 0, %s30
    %s19 = sphi 0, %s26
    %s20 = sphi 0, %s18
    %s21 = sphi 0, %s19
    %s22 = sphi 0, %s20
    %s23 = sphi 0, %s21
    %s35 = sphi 0, %s37
    %s38 = sphi 0, %s35
    %s39 = sphi 0, %s38
    %s55 = sphi 0, %s39
    %s61 = sphi 0, %s63
    %s64 = sphi 0, %s61
    %s65 = sphi 0, %s64
    %s81 = sphi 0, %s65
    %s87 = sphi 0, %s89
    %s90 = sphi 0, %s87
    %s91 = sphi 0, %s90
    %s107 = sphi 0, %s91
    %s111 = sphi 0, %s111
    %s113 = sphi 0, %s111
    %s114 = sphi 0, %s113
    %s128 = sphi 0, %s114
    %s132 = sphi 0, %s132
    %s134 = sphi 0, %s132
    %s135 = sphi 0, %s134
    %s149 = sphi 0, %s135
    %s157 = sphi 0, %s159
    %s160 = sphi 0, %s157
    %s161 = sphi 0, %s160
    %s177 = sphi 0, %s161
  $region4: #{tpu_custom_call.1} parent=0 // loop_header_branch
    %14 = sbr.rel (%p12) target = $region8
  $region5: #{tpu_custom_call.1} parent=0 // loop_body
    %s16 = ssub.s32 %s11, 1
    %s17 = ssub.s32 %s11, 2
    %s24 = sadd.s32 1, %s19
    %p25 = scmp.ge.s32.totalorder %s24, 1
    %s26 = scalar_select %p25, 0, %s24
    %s27 = sadd.s32 1, %s18
    %s28 = scalar_select %p25, %s27, %s18
    %p29 = scmp.ge.s32.totalorder %s28, 2
    %s30 = scalar_select %p29, 0, %s28
    %s31 = ssub.s32 %s18, %s30
    %s32 = ssub.s32 %s19, %s26
    %s33 = sor.u32 %s31, %s32
    %p34 = scmp.eq.s32.totalorder %s33, 0
    %s36 = sadd.s32 %s35, 1
    %s37 = scalar_select %p34, %s35, %s36
    %p40 = pneg %p34
    %p41 = scmp.eq.s32.totalorder %s11, 1
    %p42 = por %p40, %p41
    %p43 = scmp.ne.s32.totalorder %s35, %s38
    %p44 = scmp.eq.s32.totalorder %s11, 0
    %p45 = por %p43, %p44
    %p46 = scmp.ne.s32.totalorder %s35, %s38
    %p47 = scmp.eq.s32.totalorder %s16, 1
    %p48 = por %p46, %p47
    %p49 = scmp.ne.s32.totalorder %s38, %s39
    %p50 = scmp.eq.s32.totalorder %s16, 0
    %p51 = por %p49, %p50
    %p52 = scmp.ne.s32.totalorder %s38, %s39
    %p53 = scmp.eq.s32.totalorder %s17, 1
    %p54 = por %p52, %p53
    %p56 = scmp.ne.s32.totalorder %s39, %s55
    %p57 = scmp.eq.s32.totalorder %s17, 0
    %p58 = por %p56, %p57
    %s59 = ssub.s32 %s18, %s30
    %p60 = scmp.eq.s32.totalorder %s59, 0
    %s62 = sadd.s32 %s61, 1
    %s63 = scalar_select %p60, %s61, %s62
    %p66 = pneg %p60
    %p67 = scmp.eq.s32.totalorder %s11, 1
    %p68 = por %p66, %p67
    %p69 = scmp.ne.s32.totalorder %s61, %s64
    %p70 = scmp.eq.s32.totalorder %s11, 0
    %p71 = por %p69, %p70
    %p72 = scmp.ne.s32.totalorder %s61, %s64
    %p73 = scmp.eq.s32.totalorder %s16, 1
    %p74 = por %p72, %p73
    %p75 = scmp.ne.s32.totalorder %s64, %s65
    %p76 = scmp.eq.s32.totalorder %s16, 0
    %p77 = por %p75, %p76
    %p78 = scmp.ne.s32.totalorder %s64, %s65
    %p79 = scmp.eq.s32.totalorder %s17, 1
    %p80 = por %p78, %p79
    %p82 = scmp.ne.s32.totalorder %s65, %s81
    %p83 = scmp.eq.s32.totalorder %s17, 0
    %p84 = por %p82, %p83
    %s85 = ssub.s32 %s18, %s30
    %p86 = scmp.eq.s32.totalorder %s85, 0
    %s88 = sadd.s32 %s87, 1
    %s89 = scalar_select %p86, %s87, %s88
    %p92 = pneg %p86
    %p93 = scmp.eq.s32.totalorder %s11, 1
    %p94 = por %p92, %p93
    %p95 = scmp.ne.s32.totalorder %s87, %s90
    %p96 = scmp.eq.s32.totalorder %s11, 0
    %p97 = por %p95, %p96
    %p98 = scmp.ne.s32.totalorder %s87, %s90
    %p99 = scmp.eq.s32.totalorder %s16, 1
    %p100 = por %p98, %p99
    %p101 = scmp.ne.s32.totalorder %s90, %s91
    %p102 = scmp.eq.s32.totalorder %s16, 0
    %p103 = por %p101, %p102
    %p104 = scmp.ne.s32.totalorder %s90, %s91
    %p105 = scmp.eq.s32.totalorder %s17, 1
    %p106 = por %p104, %p105
    %p108 = scmp.ne.s32.totalorder %s91, %s107
    %p109 = scmp.eq.s32.totalorder %s17, 0
    %p110 = por %p108, %p109
    %s112 = sadd.s32 %s111, 1
    %p115 = scmp.eq.s32.totalorder %s11, 1
    %p116 = scmp.ne.s32.totalorder %s111, %s113
    %p117 = scmp.eq.s32.totalorder %s11, 0
    %p118 = por %p116, %p117
    %p119 = scmp.ne.s32.totalorder %s111, %s113
    %p120 = scmp.eq.s32.totalorder %s16, 1
    %p121 = por %p119, %p120
    %p122 = scmp.ne.s32.totalorder %s113, %s114
    %p123 = scmp.eq.s32.totalorder %s16, 0
    %p124 = por %p122, %p123
    %p125 = scmp.ne.s32.totalorder %s113, %s114
    %p126 = scmp.eq.s32.totalorder %s17, 1
    %p127 = por %p125, %p126
    %p129 = scmp.ne.s32.totalorder %s114, %s128
    %p130 = scmp.eq.s32.totalorder %s17, 0
    %p131 = por %p129, %p130
    %s133 = sadd.s32 %s132, 1
    %p136 = scmp.eq.s32.totalorder %s11, 1
    %p137 = scmp.ne.s32.totalorder %s132, %s134
    %p138 = scmp.eq.s32.totalorder %s11, 0
    %p139 = por %p137, %p138
    %p140 = scmp.ne.s32.totalorder %s132, %s134
    %p141 = scmp.eq.s32.totalorder %s16, 1
    %p142 = por %p140, %p141
    %p143 = scmp.ne.s32.totalorder %s134, %s135
    %p144 = scmp.eq.s32.totalorder %s16, 0
    %p145 = por %p143, %p144
    %p146 = scmp.ne.s32.totalorder %s134, %s135
    %p147 = scmp.eq.s32.totalorder %s17, 1
    %p148 = por %p146, %p147
    %p150 = scmp.ne.s32.totalorder %s135, %s149
    %p151 = scmp.eq.s32.totalorder %s17, 0
    %p152 = por %p150, %p151
    %s153 = ssub.s32 %s18, %s30
    %s154 = ssub.s32 %s19, %s26
    %s155 = sor.u32 %s153, %s154
    %p156 = scmp.eq.s32.totalorder %s155, 0
    %s158 = sadd.s32 %s157, 1
    %s159 = scalar_select %p156, %s157, %s158
    %p162 = pneg %p156
    %p163 = scmp.eq.s32.totalorder %s11, 1
    %p164 = por %p162, %p163
    %p165 = scmp.ne.s32.totalorder %s157, %s160
    %p166 = scmp.eq.s32.totalorder %s11, 0
    %p167 = por %p165, %p166
    %p168 = scmp.ne.s32.totalorder %s157, %s160
    %p169 = scmp.eq.s32.totalorder %s16, 1
    %p170 = por %p168, %p169
    %p171 = scmp.ne.s32.totalorder %s160, %s161
    %p172 = scmp.eq.s32.totalorder %s16, 0
    %p173 = por %p171, %p172
    %p174 = scmp.ne.s32.totalorder %s160, %s161
    %p175 = scmp.eq.s32.totalorder %s17, 1
    %p176 = por %p174, %p175
    %p178 = scmp.ne.s32.totalorder %s161, %s177
    %p179 = scmp.eq.s32.totalorder %s17, 0
    %p180 = por %p178, %p179
    %p181 = scmp.le.s32.totalorder 1, %s11
    %p182 = scmp.lt.s32.totalorder %s11, 3
    %p183 = pnand %p181, %p182
    %p184 = pneg %p183
    // Predicated region
    $region9: #{tpu_custom_call.1} parent=5 // pred_check
      _
    $region10: #{tpu_custom_call.1} parent=5 // pred_check_branch
      %186 = sbr.rel (%p183) target = $region12
    $region11: #{tpu_custom_call.1} parent=5 // pred_region
      %s187 = ssub.s32 %s11, 1
      // Predicated region
      $region13: #{tpu_custom_call.1} parent=11 // pred_check
        %p188 = pneg %p124
      $region14: #{tpu_custom_call.1} parent=11 // pred_check_branch
        %190 = sbr.rel (%p188) target = $region16
      $region15: #{tpu_custom_call.1} parent=11 // pred_region
        _
      $region16: #{tpu_custom_call.1} parent=11 // pred_fallthru
        _
      // Predicated region
      $region17: #{tpu_custom_call.1} parent=11 // pred_check
        %p191 = pneg %p145
      $region18: #{tpu_custom_call.1} parent=11 // pred_check_branch
        %193 = sbr.rel (%p191) target = $region20
      $region19: #{tpu_custom_call.1} parent=11 // pred_region
        _
      $region20: #{tpu_custom_call.1} parent=11 // pred_fallthru
        _
    $region12: #{tpu_custom_call.1} parent=5 // pred_fallthru
      _
    %p194 = scmp.lt.s32.totalorder %s11, 2
    // Predicated region
    $region21: #{tpu_custom_call.1} parent=5 // pred_check
      %p195 = pneg %p194
    $region22: #{tpu_custom_call.1} parent=5 // pred_check_branch
      %197 = sbr.rel (%p195) target = $region24
    $region23: #{tpu_custom_call.1} parent=5 // pred_region
      // Predicated region
      $region25: #{tpu_custom_call.1} parent=23 // pred_check
        %p198 = pneg %p45
      $region26: #{tpu_custom_call.1} parent=23 // pred_check_branch
        %200 = sbr.rel (%p198) target = $region28
      $region27: #{tpu_custom_call.1} parent=23 // pred_region
        %s201 = smul.u32 8, %s19
        %p202 = scmp.lt.s32.totalorder %s18, 1
        %s203 = scalar_select %p202, %s18, 1
        %p204 = scmp.lt.s32.totalorder %s201, 7
        %s205 = scalar_select %p204, %s201, 7
        %s206 = smul.addr %s203, 32
        %s207 = sadd.s32 %s205, %s206
        %s208 = smul.addr %s207, 4
        %s209 = scalar_lea.vmem %s0, %s208
        %s210 = smul.u32 8, %s19
      $region28: #{tpu_custom_call.1} parent=23 // pred_fallthru
        _
      // Predicated region
      $region29: #{tpu_custom_call.1} parent=23 // pred_check
        %p211 = pneg %p71
      $region30: #{tpu_custom_call.1} parent=23 // pred_check_branch
        %213 = sbr.rel (%p211) target = $region32
      $region31: #{tpu_custom_call.1} parent=23 // pred_region
        %p214 = scmp.lt.s32.totalorder %s18, 1
        %s215 = scalar_select %p214, %s18, 1
        %s216 = smul.addr %s215, 32
        %s217 = smul.addr %s216, 4
        %s218 = scalar_lea.vmem %s1, %s217
      $region32: #{tpu_custom_call.1} parent=23 // pred_fallthru
        _
      // Predicated region
      $region33: #{tpu_custom_call.1} parent=23 // pred_check
        %p219 = pneg %p97
      $region34: #{tpu_custom_call.1} parent=23 // pred_check_branch
        %221 = sbr.rel (%p219) target = $region36
      $region35: #{tpu_custom_call.1} parent=23 // pred_region
        %p222 = scmp.lt.s32.totalorder %s18, 1
        %s223 = scalar_select %p222, %s18, 1
        %s224 = smul.addr %s223, 32
        %s225 = smul.addr %s224, 4
        %s226 = scalar_lea.vmem %s2, %s225
      $region36: #{tpu_custom_call.1} parent=23 // pred_fallthru
        _
    $region24: #{tpu_custom_call.1} parent=5 // pred_fallthru
      _
    %p227 = scmp.le.s32.totalorder 1, %s11
    %p228 = scmp.lt.s32.totalorder %s11, 3
    %p229 = pnand %p227, %p228
    %p230 = pneg %p229
    // Predicated region
    $region37: #{tpu_custom_call.1} parent=5 // pred_check
      _
    $region38: #{tpu_custom_call.1} parent=5 // pred_check_branch
      %232 = sbr.rel (%p229) target = $region40
    $region39: #{tpu_custom_call.1} parent=5 // pred_region
      %s233 = ssub.s32 %s11, 1
      %s234 = smul.u32 8, %s21
      %p235 = scmp.lt.s32.totalorder %s20, 1
      %s236 = scalar_select %p235, %s20, 1
      %p237 = scmp.lt.s32.totalorder %s234, 7
      %s238 = scalar_select %p237, %s234, 7
      %s239 = smul.addr %s236, 32
      %s240 = sadd.s32 %s238, %s239
      %s241 = smul.addr %s240, 4
      %s242 = scalar_lea.vmem %s0, %s241
      %p243 = pneg %p51
      %p244 = pneg %p48
      %p245 = scmp.lt.s32.totalorder %s20, 1
      %s246 = scalar_select %p245, %s20, 1
      %s247 = smul.addr %s246, 32
      %s248 = smul.addr %s247, 4
      %s249 = scalar_lea.vmem %s1, %s248
      %p250 = pneg %p77
      %p251 = pneg %p74
      %p252 = scmp.lt.s32.totalorder %s20, 1
      %s253 = scalar_select %p252, %s20, 1
      %s254 = smul.addr %s253, 32
      %s255 = smul.addr %s254, 4
      %s256 = scalar_lea.vmem %s2, %s255
      %p257 = pneg %p103
      %p258 = pneg %p100
      %p259 = pneg %p124
      %p260 = pneg %p121
      %p261 = pneg %p145
      %p262 = pneg %p142
      %p263 = pneg %p173
      %p264 = pneg %p170
      %s265 = smul.u32 8, %s21
      %p266 = scmp.lt.s32.totalorder %s20, 1
      %s267 = scalar_select %p266, %s20, 1
      %p268 = scmp.lt.s32.totalorder %s265, 7
      %s269 = scalar_select %p268, %s265, 7
      %s270 = smul.addr %s267, 8
      %s271 = sadd.s32 %s269, %s270
      %s272 = smul.addr %s271, 8
      %s273 = scalar_lea.vmem %s5, %s272
      %s274 = smul.u32 8, %s21
      %p275 = scmp.lt.s32.totalorder %s20, 1
      %s276 = scalar_select %p275, %s20, 1
      %p277 = scmp.lt.s32.totalorder %s274, 7
      %s278 = scalar_select %p277, %s274, 7
      %s279 = smul.addr %s276, 32
      %s280 = sadd.s32 %s278, %s279
      %s281 = smul.addr %s280, 4
      %s282 = scalar_lea.vmem %s0, %s281
      %s283 = smul.u32 8, %s21
      %p284 = scmp.lt.s32.totalorder %s20, 1
      %s285 = scalar_select %p284, %s20, 1
      %s286 = smul.addr %s285, 32
      %s287 = smul.addr %s286, 4
      %s288 = scalar_lea.vmem %s1, %s287
      %p289 = scmp.lt.s32.totalorder %s20, 1
      %s290 = scalar_select %p289, %s20, 1
      %s291 = smul.addr %s290, 32
      %s292 = smul.addr %s291, 4
      %s293 = scalar_lea.vmem %s2, %s292
      %s294 = smul.u32 8, %s21
      %p295 = scmp.lt.s32.totalorder %s20, 1
      %s296 = scalar_select %p295, %s20, 1
      %p297 = scmp.lt.s32.totalorder %s294, 7
      %s298 = scalar_select %p297, %s294, 7
      %s299 = smul.addr %s296, 8
      %s300 = sadd.s32 %s298, %s299
      %s301 = smul.addr %s300, 8
      %s302 = scalar_lea.vmem %s5, %s301
      %s303 = smul.u32 8, %s21
      %v305 = vld [vmem:[%s282] sm:$0xf]
      %v306 = vld [vmem:[%s282 + $0x4] sm:$0xf]
      %v307 = vld [vmem:[%s282 + $0x8] sm:$0xf]
      %v308 = vld [vmem:[%s282 + $0xc] sm:$0xf]
      %v309 = vld [vmem:[%s282 + $0x10] sm:$0xf]
      %v310 = vld [vmem:[%s282 + $0x14] sm:$0xf]
      %v311 = vld [vmem:[%s282 + $0x18] sm:$0xf]
      %v312 = vld [vmem:[%s282 + $0x1c] sm:$0xf]
      %v313 = vld [vmem:[%s282 + $0x20] sm:$0xf]
      %v314 = vld [vmem:[%s282 + $0x24] sm:$0xf]
      %v315 = vld [vmem:[%s282 + $0x28] sm:$0xf]
      %v316 = vld [vmem:[%s282 + $0x2c] sm:$0xf]
      %v317 = vld [vmem:[%s282 + $0x30] sm:$0xf]
      %v318 = vld [vmem:[%s282 + $0x34] sm:$0xf]
      %v319 = vld [vmem:[%s282 + $0x38] sm:$0xf]
      %v320 = vld [vmem:[%s282 + $0x3c] sm:$0xf]
      %v321 = vld [vmem:[%s282 + $0x40] sm:$0xf]
      %v322 = vld [vmem:[%s282 + $0x44] sm:$0xf]
      %v323 = vld [vmem:[%s282 + $0x48] sm:$0xf]
      %v324 = vld [vmem:[%s282 + $0x4c] sm:$0xf]
      %v325 = vld [vmem:[%s282 + $0x50] sm:$0xf]
      %v326 = vld [vmem:[%s282 + $0x54] sm:$0xf]
      %v327 = vld [vmem:[%s282 + $0x58] sm:$0xf]
      %v328 = vld [vmem:[%s282 + $0x5c] sm:$0xf]
      %v329 = vld [vmem:[%s282 + $0x60] sm:$0xf]
      %v330 = vld [vmem:[%s282 + $0x64] sm:$0xf]
      %v331 = vld [vmem:[%s282 + $0x68] sm:$0xf]
      %v332 = vld [vmem:[%s282 + $0x6c] sm:$0xf]
      %v333 = vld [vmem:[%s282 + $0x70] sm:$0xf]
      %v334 = vld [vmem:[%s282 + $0x74] sm:$0xf]
      %v335 = vld [vmem:[%s282 + $0x78] sm:$0xf]
      %v336 = vld [vmem:[%s282 + $0x7c] sm:$0xf]
      %v337 = vld [vmem:[%s288] sm:$0xf]
      %v338 = vld [vmem:[%s288 + $0x4] sm:$0xf]
      %v339 = vld [vmem:[%s288 + $0x8] sm:$0xf]
      %v340 = vld [vmem:[%s288 + $0xc] sm:$0xf]
      %v341 = vld [vmem:[%s288 + $0x10] sm:$0xf]
      %v342 = vld [vmem:[%s288 + $0x14] sm:$0xf]
      %v343 = vld [vmem:[%s288 + $0x18] sm:$0xf]
      %v344 = vld [vmem:[%s288 + $0x1c] sm:$0xf]
      %v345 = vld [vmem:[%s288 + $0x20] sm:$0xf]
      %v346 = vld [vmem:[%s288 + $0x24] sm:$0xf]
      %v347 = vld [vmem:[%s288 + $0x28] sm:$0xf]
      %v348 = vld [vmem:[%s288 + $0x2c] sm:$0xf]
      %v349 = vld [vmem:[%s288 + $0x30] sm:$0xf]
      %v350 = vld [vmem:[%s288 + $0x34] sm:$0xf]
      %v351 = vld [vmem:[%s288 + $0x38] sm:$0xf]
      %v352 = vld [vmem:[%s288 + $0x3c] sm:$0xf]
      %v353 = vld [vmem:[%s288 + $0x40] sm:$0xf]
      %v354 = vld [vmem:[%s288 + $0x44] sm:$0xf]
      %v355 = vld [vmem:[%s288 + $0x48] sm:$0xf]
      %v356 = vld [vmem:[%s288 + $0x4c] sm:$0xf]
      %v357 = vld [vmem:[%s288 + $0x50] sm:$0xf]
      %v358 = vld [vmem:[%s288 + $0x54] sm:$0xf]
      %v359 = vld [vmem:[%s288 + $0x58] sm:$0xf]
      %v360 = vld [vmem:[%s288 + $0x5c] sm:$0xf]
      %v361 = vld [vmem:[%s288 + $0x60] sm:$0xf]
      %v362 = vld [vmem:[%s288 + $0x64] sm:$0xf]
      %v363 = vld [vmem:[%s288 + $0x68] sm:$0xf]
      %v364 = vld [vmem:[%s288 + $0x6c] sm:$0xf]
      %v365 = vld [vmem:[%s288 + $0x70] sm:$0xf]
      %v366 = vld [vmem:[%s288 + $0x74] sm:$0xf]
      %v367 = vld [vmem:[%s288 + $0x78] sm:$0xf]
      %v368 = vld [vmem:[%s288 + $0x7c] sm:$0xf]
      %v369 = vld [vmem:[%s293] sm:$0xf]
      %v370 = vld [vmem:[%s293 + $0x4] sm:$0xf]
      %v371 = vld [vmem:[%s293 + $0x8] sm:$0xf]
      %v372 = vld [vmem:[%s293 + $0xc] sm:$0xf]
      %v373 = vld [vmem:[%s293 + $0x10] sm:$0xf]
      %v374 = vld [vmem:[%s293 + $0x14] sm:$0xf]
      %v375 = vld [vmem:[%s293 + $0x18] sm:$0xf]
      %v376 = vld [vmem:[%s293 + $0x1c] sm:$0xf]
      %v377 = vld [vmem:[%s293 + $0x20] sm:$0xf]
      %v378 = vld [vmem:[%s293 + $0x24] sm:$0xf]
      %v379 = vld [vmem:[%s293 + $0x28] sm:$0xf]
      %v380 = vld [vmem:[%s293 + $0x2c] sm:$0xf]
      %v381 = vld [vmem:[%s293 + $0x30] sm:$0xf]
      %v382 = vld [vmem:[%s293 + $0x34] sm:$0xf]
      %v383 = vld [vmem:[%s293 + $0x38] sm:$0xf]
      %v384 = vld [vmem:[%s293 + $0x3c] sm:$0xf]
      %v385 = vld [vmem:[%s293 + $0x40] sm:$0xf]
      %v386 = vld [vmem:[%s293 + $0x44] sm:$0xf]
      %v387 = vld [vmem:[%s293 + $0x48] sm:$0xf]
      %v388 = vld [vmem:[%s293 + $0x4c] sm:$0xf]
      %v389 = vld [vmem:[%s293 + $0x50] sm:$0xf]
      %v390 = vld [vmem:[%s293 + $0x54] sm:$0xf]
      %v391 = vld [vmem:[%s293 + $0x58] sm:$0xf]
      %v392 = vld [vmem:[%s293 + $0x5c] sm:$0xf]
      %v393 = vld [vmem:[%s293 + $0x60] sm:$0xf]
      %v394 = vld [vmem:[%s293 + $0x64] sm:$0xf]
      %v395 = vld [vmem:[%s293 + $0x68] sm:$0xf]
      %v396 = vld [vmem:[%s293 + $0x6c] sm:$0xf]
      %v397 = vld [vmem:[%s293 + $0x70] sm:$0xf]
      %v398 = vld [vmem:[%s293 + $0x74] sm:$0xf]
      %v399 = vld [vmem:[%s293 + $0x78] sm:$0xf]
      %v400 = vld [vmem:[%s293 + $0x7c] sm:$0xf]
      %v409 = vunpack.c.l.b16 %v305
      %v410 = vunpack.c.l.b16 %v306
      %v411 = vunpack.c.l.b16 %v307
      %v412 = vunpack.c.l.b16 %v308
      %v413 = vunpack.c.l.b16 %v309
      %v414 = vunpack.c.l.b16 %v310
      %v415 = vunpack.c.l.b16 %v311
      %v416 = vunpack.c.l.b16 %v312
      %v417 = vpack.c.b16 %v410, %v409
      %v418 = vpack.c.b16 %v412, %v411
      %v419 = vpack.c.b16 %v414, %v413
      %v420 = vpack.c.b16 %v416, %v415
      %v429 = vunpack.c.l.b16 %v337
      %v430 = vunpack.c.l.b16 %v338
      %v431 = vunpack.c.l.b16 %v339
      %v432 = vunpack.c.l.b16 %v340
      %v433 = vunpack.c.l.b16 %v341
      %v434 = vunpack.c.l.b16 %v342
      %v435 = vunpack.c.l.b16 %v343
      %v436 = vunpack.c.l.b16 %v344
      %v437 = vpack.c.b16 %v430, %v429
      %v438 = vpack.c.b16 %v432, %v431
      %v439 = vpack.c.b16 %v434, %v433
      %v440 = vpack.c.b16 %v436, %v435
      %vm441 = vcmask 64512
      %v443 = vsel %vm441, %v417, 0
      %v446 = vsel %vm441, %v418, 0
      %v449 = vsel %vm441, %v419, 0
      %v452 = vsel %vm441, %v420, 0
      %v455 = vsel %vm441, %v437, 0
      %v458 = vsel %vm441, %v438, 0
      %v461 = vsel %vm441, %v439, 0
      %v464 = vsel %vm441, %v440, 0
      %466 = vmatprep.subr.bf16.mxu0 0
      %467 = vmatpush1.bf16.xpose.msra.mxu0 0
      %468 = vmatprep.subr.bf16.mxu0 0
      %469 = vmatpush1.bf16.xpose.msra.mxu0 0
      %470 = vmatprep.subr.bf16.mxu0 0
      %471 = vmatpush1.bf16.xpose.msra.mxu0 0
      %472 = vmatprep.subr.bf16.mxu0 0
      %473 = vmatpush1.bf16.xpose.msra.mxu0 0
      %474 = vmatprep.subr.bf16.mxu0 0
      %475 = vmatpush1.bf16.xpose.msra.mxu0 %v464
      %476 = vmatprep.subr.bf16.mxu0 0
      %477 = vmatpush1.bf16.xpose.msra.mxu0 %v461
      %478 = vmatprep.subr.bf16.mxu0 0
      %479 = vmatpush1.bf16.xpose.msra.mxu0 %v458
      %480 = vmatprep.subr.bf16.mxu0 0
      %481 = vmatpush1.bf16.xpose.msra.mxu0 %v455
      %482 = vmatprep.subr.bf16.mxu0 0
      %483 = vmatpush2.bf16.xpose.msra.mxu0 0
      %484 = vmatprep.subr.bf16.mxu0 0
      %485 = vmatpush2.bf16.xpose.msra.mxu0 0
      %486 = vmatprep.subr.bf16.mxu0 0
      %487 = vmatpush2.bf16.xpose.msra.mxu0 0
      %488 = vmatprep.subr.bf16.mxu0 0
      %489 = vmatpush2.bf16.xpose.msra.mxu0 0
      %490 = vmatprep.subr.bf16.mxu0 0
      %491 = vmatpush2.bf16.xpose.msra.mxu0 0
      %492 = vmatprep.subr.bf16.mxu0 0
      %493 = vmatpush2.bf16.xpose.msra.mxu0 0
      %494 = vmatprep.subr.bf16.mxu0 0
      %495 = vmatpush2.bf16.xpose.msra.mxu0 0
      %496 = vmatprep.subr.bf16.mxu0 0
      %497 = vmatpush2.bf16.xpose.msra.mxu0 0
      %498 = vmatprep.mubr.bf16.mxu0 0
      %499 = vmatmul.mubr.bf16.gmra.mxu0 %v443
      %v500 = vpop.f32.mrf.mxu0
      %v501 = vadd.f32 0.0, %v500
      %v502 = vpop.f32.mrf.mxu0
      %v503 = vpop.f32.mrf.mxu0
      %v504 = vadd.f32 0.0, %v503
      %v505 = vpop.f32.mrf.mxu0
      %506 = vmatprep.mubr.bf16.mxu0 0
      %507 = vmatmul.mubr.bf16.gmra.mxu0 %v446
      %v508 = vpop.f32.mrf.mxu0
      %v509 = vadd.f32 0.0, %v508
      %v510 = vpop.f32.mrf.mxu0
      %v511 = vpop.f32.mrf.mxu0
      %v512 = vadd.f32 0.0, %v511
      %v513 = vpop.f32.mrf.mxu0
      %514 = vmatprep.mubr.bf16.mxu0 0
      %515 = vmatmul.mubr.bf16.gmra.mxu0 %v449
      %v516 = vpop.f32.mrf.mxu0
      %v517 = vadd.f32 0.0, %v516
      %v518 = vpop.f32.mrf.mxu0
      %v519 = vpop.f32.mrf.mxu0
      %v520 = vadd.f32 0.0, %v519
      %v521 = vpop.f32.mrf.mxu0
      %522 = vmatprep.mubr.bf16.mxu0 0
      %523 = vmatmul.mubr.bf16.gmra.mxu0 %v452
      %v524 = vpop.f32.mrf.mxu0
      %v525 = vadd.f32 0.0, %v524
      %v526 = vpop.f32.mrf.mxu0
      %v527 = vpop.f32.mrf.mxu0
      %v528 = vadd.f32 0.0, %v527
      %v529 = vpop.f32.mrf.mxu0
      %530 = vdwg.mxu0
      %v539 = vunpack.c.l.b16 %v313
      %v540 = vunpack.c.l.b16 %v314
      %v541 = vunpack.c.l.b16 %v315
      %v542 = vunpack.c.l.b16 %v316
      %v543 = vunpack.c.l.b16 %v317
      %v544 = vunpack.c.l.b16 %v318
      %v545 = vunpack.c.l.b16 %v319
      %v546 = vunpack.c.l.b16 %v320
      %v547 = vpack.c.b16 %v540, %v539
      %v548 = vpack.c.b16 %v542, %v541
      %v549 = vpack.c.b16 %v544, %v543
      %v550 = vpack.c.b16 %v546, %v545
      %v559 = vunpack.c.l.b16 %v345
      %v560 = vunpack.c.l.b16 %v346
      %v561 = vunpack.c.l.b16 %v347
      %v562 = vunpack.c.l.b16 %v348
      %v563 = vunpack.c.l.b16 %v349
      %v564 = vunpack.c.l.b16 %v350
      %v565 = vunpack.c.l.b16 %v351
      %v566 = vunpack.c.l.b16 %v352
      %v567 = vpack.c.b16 %v560, %v559
      %v568 = vpack.c.b16 %v562, %v561
      %v569 = vpack.c.b16 %v564, %v563
      %v570 = vpack.c.b16 %v566, %v565
      %v572 = vsel %vm441, %v547, 0
      %v575 = vsel %vm441, %v548, 0
      %v578 = vsel %vm441, %v549, 0
      %v581 = vsel %vm441, %v550, 0
      %v584 = vsel %vm441, %v567, 0
      %v587 = vsel %vm441, %v568, 0
      %v590 = vsel %vm441, %v569, 0
      %v593 = vsel %vm441, %v570, 0
      %595 = vmatprep.subr.bf16.mxu0 0
      %596 = vmatpush1.bf16.xpose.msra.mxu0 0
      %597 = vmatprep.subr.bf16.mxu0 0
      %598 = vmatpush1.bf16.xpose.msra.mxu0 0
      %599 = vmatprep.subr.bf16.mxu0 0
      %600 = vmatpush1.bf16.xpose.msra.mxu0 0
      %601 = vmatprep.subr.bf16.mxu0 0
      %602 = vmatpush1.bf16.xpose.msra.mxu0 0
      %603 = vmatprep.subr.bf16.mxu0 0
      %604 = vmatpush1.bf16.xpose.msra.mxu0 %v593
      %605 = vmatprep.subr.bf16.mxu0 0
      %606 = vmatpush1.bf16.xpose.msra.mxu0 %v590
      %607 = vmatprep.subr.bf16.mxu0 0
      %608 = vmatpush1.bf16.xpose.msra.mxu0 %v587
      %609 = vmatprep.subr.bf16.mxu0 0
      %610 = vmatpush1.bf16.xpose.msra.mxu0 %v584
      %611 = vmatprep.subr.bf16.mxu0 0
      %612 = vmatpush2.bf16.xpose.msra.mxu0 0
      %613 = vmatprep.subr.bf16.mxu0 0
      %614 = vmatpush2.bf16.xpose.msra.mxu0 0
      %615 = vmatprep.subr.bf16.mxu0 0
      %616 = vmatpush2.bf16.xpose.msra.mxu0 0
      %617 = vmatprep.subr.bf16.mxu0 0
      %618 = vmatpush2.bf16.xpose.msra.mxu0 0
      %619 = vmatprep.subr.bf16.mxu0 0
      %620 = vmatpush2.bf16.xpose.msra.mxu0 0
      %621 = vmatprep.subr.bf16.mxu0 0
      %622 = vmatpush2.bf16.xpose.msra.mxu0 0
      %623 = vmatprep.subr.bf16.mxu0 0
      %624 = vmatpush2.bf16.xpose.msra.mxu0 0
      %625 = vmatprep.subr.bf16.mxu0 0
      %626 = vmatpush2.bf16.xpose.msra.mxu0 0
      %627 = vmatprep.mubr.bf16.mxu0 0
      %628 = vmatmul.mubr.bf16.gmra.mxu0 %v572
      %v629 = vpop.f32.mrf.mxu0
      %v630 = vadd.f32 0.0, %v629
      %v631 = vpop.f32.mrf.mxu0
      %v632 = vpop.f32.mrf.mxu0
      %v633 = vadd.f32 0.0, %v632
      %v634 = vpop.f32.mrf.mxu0
      %635 = vmatprep.mubr.bf16.mxu0 0
      %636 = vmatmul.mubr.bf16.gmra.mxu0 %v575
      %v637 = vpop.f32.mrf.mxu0
      %v638 = vadd.f32 0.0, %v637
      %v639 = vpop.f32.mrf.mxu0
      %v640 = vpop.f32.mrf.mxu0
      %v641 = vadd.f32 0.0, %v640
      %v642 = vpop.f32.mrf.mxu0
      %643 = vmatprep.mubr.bf16.mxu0 0
      %644 = vmatmul.mubr.bf16.gmra.mxu0 %v578
      %v645 = vpop.f32.mrf.mxu0
      %v646 = vadd.f32 0.0, %v645
      %v647 = vpop.f32.mrf.mxu0
      %v648 = vpop.f32.mrf.mxu0
      %v649 = vadd.f32 0.0, %v648
      %v650 = vpop.f32.mrf.mxu0
      %651 = vmatprep.mubr.bf16.mxu0 0
      %652 = vmatmul.mubr.bf16.gmra.mxu0 %v581
      %v653 = vpop.f32.mrf.mxu0
      %v654 = vadd.f32 0.0, %v653
      %v655 = vpop.f32.mrf.mxu0
      %v656 = vpop.f32.mrf.mxu0
      %v657 = vadd.f32 0.0, %v656
      %v658 = vpop.f32.mrf.mxu0
      %659 = vdwg.mxu0
      %v668 = vunpack.c.l.b16 %v321
      %v669 = vunpack.c.l.b16 %v322
      %v670 = vunpack.c.l.b16 %v323
      %v671 = vunpack.c.l.b16 %v324
      %v672 = vunpack.c.l.b16 %v325
      %v673 = vunpack.c.l.b16 %v326
      %v674 = vunpack.c.l.b16 %v327
      %v675 = vunpack.c.l.b16 %v328
      %v676 = vpack.c.b16 %v669, %v668
      %v677 = vpack.c.b16 %v671, %v670
      %v678 = vpack.c.b16 %v673, %v672
      %v679 = vpack.c.b16 %v675, %v674
      %v688 = vunpack.c.l.b16 %v353
      %v689 = vunpack.c.l.b16 %v354
      %v690 = vunpack.c.l.b16 %v355
      %v691 = vunpack.c.l.b16 %v356
      %v692 = vunpack.c.l.b16 %v357
      %v693 = vunpack.c.l.b16 %v358
      %v694 = vunpack.c.l.b16 %v359
      %v695 = vunpack.c.l.b16 %v360
      %v696 = vpack.c.b16 %v689, %v688
      %v697 = vpack.c.b16 %v691, %v690
      %v698 = vpack.c.b16 %v693, %v692
      %v699 = vpack.c.b16 %v695, %v694
      %v701 = vsel %vm441, %v676, 0
      %v704 = vsel %vm441, %v677, 0
      %v707 = vsel %vm441, %v678, 0
      %v710 = vsel %vm441, %v679, 0
      %v713 = vsel %vm441, %v696, 0
      %v716 = vsel %vm441, %v697, 0
      %v719 = vsel %vm441, %v698, 0
      %v722 = vsel %vm441, %v699, 0
      %724 = vmatprep.subr.bf16.mxu0 0
      %725 = vmatpush1.bf16.xpose.msra.mxu0 0
      %726 = vmatprep.subr.bf16.mxu0 0
      %727 = vmatpush1.bf16.xpose.msra.mxu0 0
      %728 = vmatprep.subr.bf16.mxu0 0
      %729 = vmatpush1.bf16.xpose.msra.mxu0 0
      %730 = vmatprep.subr.bf16.mxu0 0
      %731 = vmatpush1.bf16.xpose.msra.mxu0 0
      %732 = vmatprep.subr.bf16.mxu0 0
      %733 = vmatpush1.bf16.xpose.msra.mxu0 %v722
      %734 = vmatprep.subr.bf16.mxu0 0
      %735 = vmatpush1.bf16.xpose.msra.mxu0 %v719
      %736 = vmatprep.subr.bf16.mxu0 0
      %737 = vmatpush1.bf16.xpose.msra.mxu0 %v716
      %738 = vmatprep.subr.bf16.mxu0 0
      %739 = vmatpush1.bf16.xpose.msra.mxu0 %v713
      %740 = vmatprep.subr.bf16.mxu0 0
      %741 = vmatpush2.bf16.xpose.msra.mxu0 0
      %742 = vmatprep.subr.bf16.mxu0 0
      %743 = vmatpush2.bf16.xpose.msra.mxu0 0
      %744 = vmatprep.subr.bf16.mxu0 0
      %745 = vmatpush2.bf16.xpose.msra.mxu0 0
      %746 = vmatprep.subr.bf16.mxu0 0
      %747 = vmatpush2.bf16.xpose.msra.mxu0 0
      %748 = vmatprep.subr.bf16.mxu0 0
      %749 = vmatpush2.bf16.xpose.msra.mxu0 0
      %750 = vmatprep.subr.bf16.mxu0 0
      %751 = vmatpush2.bf16.xpose.msra.mxu0 0
      %752 = vmatprep.subr.bf16.mxu0 0
      %753 = vmatpush2.bf16.xpose.msra.mxu0 0
      %754 = vmatprep.subr.bf16.mxu0 0
      %755 = vmatpush2.bf16.xpose.msra.mxu0 0
      %756 = vmatprep.mubr.bf16.mxu0 0
      %757 = vmatmul.mubr.bf16.gmra.mxu0 %v701
      %v758 = vpop.f32.mrf.mxu0
      %v759 = vadd.f32 0.0, %v758
      %v760 = vpop.f32.mrf.mxu0
      %v761 = vpop.f32.mrf.mxu0
      %v762 = vadd.f32 0.0, %v761
      %v763 = vpop.f32.mrf.mxu0
      %764 = vmatprep.mubr.bf16.mxu0 0
      %765 = vmatmul.mubr.bf16.gmra.mxu0 %v704
      %v766 = vpop.f32.mrf.mxu0
      %v767 = vadd.f32 0.0, %v766
      %v768 = vpop.f32.mrf.mxu0
      %v769 = vpop.f32.mrf.mxu0
      %v770 = vadd.f32 0.0, %v769
      %v771 = vpop.f32.mrf.mxu0
      %772 = vmatprep.mubr.bf16.mxu0 0
      %773 = vmatmul.mubr.bf16.gmra.mxu0 %v707
      %v774 = vpop.f32.mrf.mxu0
      %v775 = vadd.f32 0.0, %v774
      %v776 = vpop.f32.mrf.mxu0
      %v777 = vpop.f32.mrf.mxu0
      %v778 = vadd.f32 0.0, %v777
      %v779 = vpop.f32.mrf.mxu0
      %780 = vmatprep.mubr.bf16.mxu0 0
      %781 = vmatmul.mubr.bf16.gmra.mxu0 %v710
      %v782 = vpop.f32.mrf.mxu0
      %v783 = vadd.f32 0.0, %v782
      %v784 = vpop.f32.mrf.mxu0
      %v785 = vpop.f32.mrf.mxu0
      %v786 = vadd.f32 0.0, %v785
      %v787 = vpop.f32.mrf.mxu0
      %788 = vdwg.mxu0
      %v797 = vunpack.c.l.b16 %v329
      %v798 = vunpack.c.l.b16 %v330
      %v799 = vunpack.c.l.b16 %v331
      %v800 = vunpack.c.l.b16 %v332
      %v801 = vunpack.c.l.b16 %v333
      %v802 = vunpack.c.l.b16 %v334
      %v803 = vunpack.c.l.b16 %v335
      %v804 = vunpack.c.l.b16 %v336
      %v805 = vpack.c.b16 %v798, %v797
      %v806 = vpack.c.b16 %v800, %v799
      %v807 = vpack.c.b16 %v802, %v801
      %v808 = vpack.c.b16 %v804, %v803
      %v817 = vunpack.c.l.b16 %v361
      %v818 = vunpack.c.l.b16 %v362
      %v819 = vunpack.c.l.b16 %v363
      %v820 = vunpack.c.l.b16 %v364
      %v821 = vunpack.c.l.b16 %v365
      %v822 = vunpack.c.l.b16 %v366
      %v823 = vunpack.c.l.b16 %v367
      %v824 = vunpack.c.l.b16 %v368
      %v825 = vpack.c.b16 %v818, %v817
      %v826 = vpack.c.b16 %v820, %v819
      %v827 = vpack.c.b16 %v822, %v821
      %v828 = vpack.c.b16 %v824, %v823
      %v830 = vsel %vm441, %v805, 0
      %v833 = vsel %vm441, %v806, 0
      %v836 = vsel %vm441, %v807, 0
      %v839 = vsel %vm441, %v808, 0
      %v842 = vsel %vm441, %v825, 0
      %v845 = vsel %vm441, %v826, 0
      %v848 = vsel %vm441, %v827, 0
      %v851 = vsel %vm441, %v828, 0
      %853 = vmatprep.subr.bf16.mxu0 0
      %854 = vmatpush1.bf16.xpose.msra.mxu0 0
      %855 = vmatprep.subr.bf16.mxu0 0
      %856 = vmatpush1.bf16.xpose.msra.mxu0 0
      %857 = vmatprep.subr.bf16.mxu0 0
      %858 = vmatpush1.bf16.xpose.msra.mxu0 0
      %859 = vmatprep.subr.bf16.mxu0 0
      %860 = vmatpush1.bf16.xpose.msra.mxu0 0
      %861 = vmatprep.subr.bf16.mxu0 0
      %862 = vmatpush1.bf16.xpose.msra.mxu0 %v851
      %863 = vmatprep.subr.bf16.mxu0 0
      %864 = vmatpush1.bf16.xpose.msra.mxu0 %v848
      %865 = vmatprep.subr.bf16.mxu0 0
      %866 = vmatpush1.bf16.xpose.msra.mxu0 %v845
      %867 = vmatprep.subr.bf16.mxu0 0
      %868 = vmatpush1.bf16.xpose.msra.mxu0 %v842
      %869 = vmatprep.subr.bf16.mxu0 0
      %870 = vmatpush2.bf16.xpose.msra.mxu0 0
      %871 = vmatprep.subr.bf16.mxu0 0
      %872 = vmatpush2.bf16.xpose.msra.mxu0 0
      %873 = vmatprep.subr.bf16.mxu0 0
      %874 = vmatpush2.bf16.xpose.msra.mxu0 0
      %875 = vmatprep.subr.bf16.mxu0 0
      %876 = vmatpush2.bf16.xpose.msra.mxu0 0
      %877 = vmatprep.subr.bf16.mxu0 0
      %878 = vmatpush2.bf16.xpose.msra.mxu0 0
      %879 = vmatprep.subr.bf16.mxu0 0
      %880 = vmatpush2.bf16.xpose.msra.mxu0 0
      %881 = vmatprep.subr.bf16.mxu0 0
      %882 = vmatpush2.bf16.xpose.msra.mxu0 0
      %883 = vmatprep.subr.bf16.mxu0 0
      %884 = vmatpush2.bf16.xpose.msra.mxu0 0
      %885 = vmatprep.mubr.bf16.mxu0 0
      %886 = vmatmul.mubr.bf16.gmra.mxu0 %v830
      %v887 = vpop.f32.mrf.mxu0
      %v888 = vadd.f32 0.0, %v887
      %v889 = vpop.f32.mrf.mxu0
      %v890 = vpop.f32.mrf.mxu0
      %v891 = vadd.f32 0.0, %v890
      %v892 = vpop.f32.mrf.mxu0
      %893 = vmatprep.mubr.bf16.mxu0 0
      %894 = vmatmul.mubr.bf16.gmra.mxu0 %v833
      %v895 = vpop.f32.mrf.mxu0
      %v896 = vadd.f32 0.0, %v895
      %v897 = vpop.f32.mrf.mxu0
      %v898 = vpop.f32.mrf.mxu0
      %v899 = vadd.f32 0.0, %v898
      %v900 = vpop.f32.mrf.mxu0
      %901 = vmatprep.mubr.bf16.mxu0 0
      %902 = vmatmul.mubr.bf16.gmra.mxu0 %v836
      %v903 = vpop.f32.mrf.mxu0
      %v904 = vadd.f32 0.0, %v903
      %v905 = vpop.f32.mrf.mxu0
      %v906 = vpop.f32.mrf.mxu0
      %v907 = vadd.f32 0.0, %v906
      %v908 = vpop.f32.mrf.mxu0
      %909 = vmatprep.mubr.bf16.mxu0 0
      %910 = vmatmul.mubr.bf16.gmra.mxu0 %v839
      %v911 = vpop.f32.mrf.mxu0
      %v912 = vadd.f32 0.0, %v911
      %v913 = vpop.f32.mrf.mxu0
      %v914 = vpop.f32.mrf.mxu0
      %v915 = vadd.f32 0.0, %v914
      %v916 = vpop.f32.mrf.mxu0
      %917 = vdwg.mxu0
      %vm918 = vcmask 523264
      %v919 = vsel %vm918, %v501, -inf
      %920 = vmax.xlane.f32.xlu0 %v919
      %v921 = vpop.xlane.xlu0 %920
      %v922 = vsel %vm918, %v504, -inf
      %923 = vmax.xlane.f32.xlu0 %v922
      %v924 = vpop.xlane.xlu0 %923
      %v925 = vsel %vm918, %v509, -inf
      %926 = vmax.xlane.f32.xlu0 %v925
      %v927 = vpop.xlane.xlu0 %926
      %v928 = vsel %vm918, %v512, -inf
      %929 = vmax.xlane.f32.xlu0 %v928
      %v930 = vpop.xlane.xlu0 %929
      %v931 = vsel %vm918, %v517, -inf
      %932 = vmax.xlane.f32.xlu0 %v931
      %v933 = vpop.xlane.xlu0 %932
      %v934 = vsel %vm918, %v520, -inf
      %935 = vmax.xlane.f32.xlu0 %v934
      %v936 = vpop.xlane.xlu0 %935
      %v937 = vsel %vm918, %v525, -inf
      %938 = vmax.xlane.f32.xlu0 %v937
      %v939 = vpop.xlane.xlu0 %938
      %v940 = vsel %vm918, %v528, -inf
      %941 = vmax.xlane.f32.xlu0 %v940
      %v942 = vpop.xlane.xlu0 %941
      %v943 = vsel %vm918, %v630, -inf
      %944 = vmax.xlane.f32.xlu0 %v943
      %v945 = vpop.xlane.xlu0 %944
      %v946 = vsel %vm918, %v633, -inf
      %947 = vmax.xlane.f32.xlu0 %v946
      %v948 = vpop.xlane.xlu0 %947
      %v949 = vsel %vm918, %v638, -inf
      %950 = vmax.xlane.f32.xlu0 %v949
      %v951 = vpop.xlane.xlu0 %950
      %v952 = vsel %vm918, %v641, -inf
      %953 = vmax.xlane.f32.xlu0 %v952
      %v954 = vpop.xlane.xlu0 %953
      %v955 = vsel %vm918, %v646, -inf
      %956 = vmax.xlane.f32.xlu0 %v955
      %v957 = vpop.xlane.xlu0 %956
      %v958 = vsel %vm918, %v649, -inf
      %959 = vmax.xlane.f32.xlu0 %v958
      %v960 = vpop.xlane.xlu0 %959
      %v961 = vsel %vm918, %v654, -inf
      %962 = vmax.xlane.f32.xlu0 %v961
      %v963 = vpop.xlane.xlu0 %962
      %v964 = vsel %vm918, %v657, -inf
      %965 = vmax.xlane.f32.xlu0 %v964
      %v966 = vpop.xlane.xlu0 %965
      %v967 = vsel %vm918, %v759, -inf
      %968 = vmax.xlane.f32.xlu0 %v967
      %v969 = vpop.xlane.xlu0 %968
      %v970 = vsel %vm918, %v762, -inf
      %971 = vmax.xlane.f32.xlu0 %v970
      %v972 = vpop.xlane.xlu0 %971
      %v973 = vsel %vm918, %v767, -inf
      %974 = vmax.xlane.f32.xlu0 %v973
      %v975 = vpop.xlane.xlu0 %974
      %v976 = vsel %vm918, %v770, -inf
      %977 = vmax.xlane.f32.xlu0 %v976
      %v978 = vpop.xlane.xlu0 %977
      %v979 = vsel %vm918, %v775, -inf
      %980 = vmax.xlane.f32.xlu0 %v979
      %v981 = vpop.xlane.xlu0 %980
      %v982 = vsel %vm918, %v778, -inf
      %983 = vmax.xlane.f32.xlu0 %v982
      %v984 = vpop.xlane.xlu0 %983
      %v985 = vsel %vm918, %v783, -inf
      %986 = vmax.xlane.f32.xlu0 %v985
      %v987 = vpop.xlane.xlu0 %986
      %v988 = vsel %vm918, %v786, -inf
      %989 = vmax.xlane.f32.xlu0 %v988
      %v990 = vpop.xlane.xlu0 %989
      %v991 = vsel %vm918, %v888, -inf
      %992 = vmax.xlane.f32.xlu0 %v991
      %v993 = vpop.xlane.xlu0 %992
      %v994 = vsel %vm918, %v891, -inf
      %995 = vmax.xlane.f32.xlu0 %v994
      %v996 = vpop.xlane.xlu0 %995
      %v997 = vsel %vm918, %v896, -inf
      %998 = vmax.xlane.f32.xlu0 %v997
      %v999 = vpop.xlane.xlu0 %998
      %v1000 = vsel %vm918, %v899, -inf
      %1001 = vmax.xlane.f32.xlu0 %v1000
      %v1002 = vpop.xlane.xlu0 %1001
      %v1003 = vsel %vm918, %v904, -inf
      %1004 = vmax.xlane.f32.xlu0 %v1003
      %v1005 = vpop.xlane.xlu0 %1004
      %v1006 = vsel %vm918, %v907, -inf
      %1007 = vmax.xlane.f32.xlu0 %v1006
      %v1008 = vpop.xlane.xlu0 %1007
      %v1009 = vsel %vm918, %v912, -inf
      %1010 = vmax.xlane.f32.xlu0 %v1009
      %v1011 = vpop.xlane.xlu0 %1010
      %v1012 = vsel %vm918, %v915, -inf
      %1013 = vmax.xlane.f32.xlu0 %v1012
      %v1014 = vpop.xlane.xlu0 %1013
      %v1015 = vsub.f32 %v501, %v921
      %v1016 = vsub.f32 %v504, %v924
      %v1017 = vsub.f32 %v509, %v927
      %v1018 = vsub.f32 %v512, %v930
      %v1019 = vsub.f32 %v517, %v933
      %v1020 = vsub.f32 %v520, %v936
      %v1021 = vsub.f32 %v525, %v939
      %v1022 = vsub.f32 %v528, %v942
      %v1023 = vsub.f32 %v630, %v945
      %v1024 = vsub.f32 %v633, %v948
      %v1025 = vsub.f32 %v638, %v951
      %v1026 = vsub.f32 %v641, %v954
      %v1027 = vsub.f32 %v646, %v957
      %v1028 = vsub.f32 %v649, %v960
      %v1029 = vsub.f32 %v654, %v963
      %v1030 = vsub.f32 %v657, %v966
      %v1031 = vsub.f32 %v759, %v969
      %v1032 = vsub.f32 %v762, %v972
      %v1033 = vsub.f32 %v767, %v975
      %v1034 = vsub.f32 %v770, %v978
      %v1035 = vsub.f32 %v775, %v981
      %v1036 = vsub.f32 %v778, %v984
      %v1037 = vsub.f32 %v783, %v987
      %v1038 = vsub.f32 %v786, %v990
      %v1039 = vsub.f32 %v888, %v993
      %v1040 = vsub.f32 %v891, %v996
      %v1041 = vsub.f32 %v896, %v999
      %v1042 = vsub.f32 %v899, %v1002
      %v1043 = vsub.f32 %v904, %v1005
      %v1044 = vsub.f32 %v907, %v1008
      %v1045 = vsub.f32 %v912, %v1011
      %v1046 = vsub.f32 %v915, %v1014
      %v1047 = vmul.f32 %v1015, 1.442695
      %v1048 = vpow.pop %v1047
      %v1049 = vmul.f32 %v1016, 1.442695
      %v1050 = vpow.pop %v1049
      %v1051 = vmul.f32 %v1017, 1.442695
      %v1052 = vpow.pop %v1051
      %v1053 = vmul.f32 %v1018, 1.442695
      %v1054 = vpow.pop %v1053
      %v1055 = vmul.f32 %v1019, 1.442695
      %v1056 = vpow.pop %v1055
      %v1057 = vmul.f32 %v1020, 1.442695
      %v1058 = vpow.pop %v1057
      %v1059 = vmul.f32 %v1021, 1.442695
      %v1060 = vpow.pop %v1059
      %v1061 = vmul.f32 %v1022, 1.442695
      %v1062 = vpow.pop %v1061
      %v1063 = vmul.f32 %v1023, 1.442695
      %v1064 = vpow.pop %v1063
      %v1065 = vmul.f32 %v1024, 1.442695
      %v1066 = vpow.pop %v1065
      %v1067 = vmul.f32 %v1025, 1.442695
      %v1068 = vpow.pop %v1067
      %v1069 = vmul.f32 %v1026, 1.442695
      %v1070 = vpow.pop %v1069
      %v1071 = vmul.f32 %v1027, 1.442695
      %v1072 = vpow.pop %v1071
      %v1073 = vmul.f32 %v1028, 1.442695
      %v1074 = vpow.pop %v1073
      %v1075 = vmul.f32 %v1029, 1.442695
      %v1076 = vpow.pop %v1075
      %v1077 = vmul.f32 %v1030, 1.442695
      %v1078 = vpow.pop %v1077
      %v1079 = vmul.f32 %v1031, 1.442695
      %v1080 = vpow.pop %v1079
      %v1081 = vmul.f32 %v1032, 1.442695
      %v1082 = vpow.pop %v1081
      %v1083 = vmul.f32 %v1033, 1.442695
      %v1084 = vpow.pop %v1083
      %v1085 = vmul.f32 %v1034, 1.442695
      %v1086 = vpow.pop %v1085
      %v1087 = vmul.f32 %v1035, 1.442695
      %v1088 = vpow.pop %v1087
      %v1089 = vmul.f32 %v1036, 1.442695
      %v1090 = vpow.pop %v1089
      %v1091 = vmul.f32 %v1037, 1.442695
      %v1092 = vpow.pop %v1091
      %v1093 = vmul.f32 %v1038, 1.442695
      %v1094 = vpow.pop %v1093
      %v1095 = vmul.f32 %v1039, 1.442695
      %v1096 = vpow.pop %v1095
      %v1097 = vmul.f32 %v1040, 1.442695
      %v1098 = vpow.pop %v1097
      %v1099 = vmul.f32 %v1041, 1.442695
      %v1100 = vpow.pop %v1099
      %v1101 = vmul.f32 %v1042, 1.442695
      %v1102 = vpow.pop %v1101
      %v1103 = vmul.f32 %v1043, 1.442695
      %v1104 = vpow.pop %v1103
      %v1105 = vmul.f32 %v1044, 1.442695
      %v1106 = vpow.pop %v1105
      %v1107 = vmul.f32 %v1045, 1.442695
      %v1108 = vpow.pop %v1107
      %v1109 = vmul.f32 %v1046, 1.442695
      %v1110 = vpow.pop %v1109
      %v1111 = vsel %vm918, %v1048, 0.0
      %1112 = vadd.xlane.f32.xlu0 %v1111
      %v1113 = vpop.xlane.xlu0 %1112
      %v1114 = vsel %vm918, %v1050, 0.0
      %1115 = vadd.xlane.f32.xlu0 %v1114
      %v1116 = vpop.xlane.xlu0 %1115
      %v1117 = vsel %vm918, %v1052, 0.0
      %1118 = vadd.xlane.f32.xlu0 %v1117
      %v1119 = vpop.xlane.xlu0 %1118
      %v1120 = vsel %vm918, %v1054, 0.0
      %1121 = vadd.xlane.f32.xlu0 %v1120
      %v1122 = vpop.xlane.xlu0 %1121
      %v1123 = vsel %vm918, %v1056, 0.0
      %1124 = vadd.xlane.f32.xlu0 %v1123
      %v1125 = vpop.xlane.xlu0 %1124
      %v1126 = vsel %vm918, %v1058, 0.0
      %1127 = vadd.xlane.f32.xlu0 %v1126
      %v1128 = vpop.xlane.xlu0 %1127
      %v1129 = vsel %vm918, %v1060, 0.0
      %1130 = vadd.xlane.f32.xlu0 %v1129
      %v1131 = vpop.xlane.xlu0 %1130
      %v1132 = vsel %vm918, %v1062, 0.0
      %1133 = vadd.xlane.f32.xlu0 %v1132
      %v1134 = vpop.xlane.xlu0 %1133
      %v1135 = vsel %vm918, %v1064, 0.0
      %1136 = vadd.xlane.f32.xlu0 %v1135
      %v1137 = vpop.xlane.xlu0 %1136
      %v1138 = vsel %vm918, %v1066, 0.0
      %1139 = vadd.xlane.f32.xlu0 %v1138
      %v1140 = vpop.xlane.xlu0 %1139
      %v1141 = vsel %vm918, %v1068, 0.0
      %1142 = vadd.xlane.f32.xlu0 %v1141
      %v1143 = vpop.xlane.xlu0 %1142
      %v1144 = vsel %vm918, %v1070, 0.0
      %1145 = vadd.xlane.f32.xlu0 %v1144
      %v1146 = vpop.xlane.xlu0 %1145
      %v1147 = vsel %vm918, %v1072, 0.0
      %1148 = vadd.xlane.f32.xlu0 %v1147
      %v1149 = vpop.xlane.xlu0 %1148
      %v1150 = vsel %vm918, %v1074, 0.0
      %1151 = vadd.xlane.f32.xlu0 %v1150
      %v1152 = vpop.xlane.xlu0 %1151
      %v1153 = vsel %vm918, %v1076, 0.0
      %1154 = vadd.xlane.f32.xlu0 %v1153
      %v1155 = vpop.xlane.xlu0 %1154
      %v1156 = vsel %vm918, %v1078, 0.0
      %1157 = vadd.xlane.f32.xlu0 %v1156
      %v1158 = vpop.xlane.xlu0 %1157
      %v1159 = vsel %vm918, %v1080, 0.0
      %1160 = vadd.xlane.f32.xlu0 %v1159
      %v1161 = vpop.xlane.xlu0 %1160
      %v1162 = vsel %vm918, %v1082, 0.0
      %1163 = vadd.xlane.f32.xlu0 %v1162
      %v1164 = vpop.xlane.xlu0 %1163
      %v1165 = vsel %vm918, %v1084, 0.0
      %1166 = vadd.xlane.f32.xlu0 %v1165
      %v1167 = vpop.xlane.xlu0 %1166
      %v1168 = vsel %vm918, %v1086, 0.0
      %1169 = vadd.xlane.f32.xlu0 %v1168
      %v1170 = vpop.xlane.xlu0 %1169
      %v1171 = vsel %vm918, %v1088, 0.0
      %1172 = vadd.xlane.f32.xlu0 %v1171
      %v1173 = vpop.xlane.xlu0 %1172
      %v1174 = vsel %vm918, %v1090, 0.0
      %1175 = vadd.xlane.f32.xlu0 %v1174
      %v1176 = vpop.xlane.xlu0 %1175
      %v1177 = vsel %vm918, %v1092, 0.0
      %1178 = vadd.xlane.f32.xlu0 %v1177
      %v1179 = vpop.xlane.xlu0 %1178
      %v1180 = vsel %vm918, %v1094, 0.0
      %1181 = vadd.xlane.f32.xlu0 %v1180
      %v1182 = vpop.xlane.xlu0 %1181
      %v1183 = vsel %vm918, %v1096, 0.0
      %1184 = vadd.xlane.f32.xlu0 %v1183
      %v1185 = vpop.xlane.xlu0 %1184
      %v1186 = vsel %vm918, %v1098, 0.0
      %1187 = vadd.xlane.f32.xlu0 %v1186
      %v1188 = vpop.xlane.xlu0 %1187
      %v1189 = vsel %vm918, %v1100, 0.0
      %1190 = vadd.xlane.f32.xlu0 %v1189
      %v1191 = vpop.xlane.xlu0 %1190
      %v1192 = vsel %vm918, %v1102, 0.0
      %1193 = vadd.xlane.f32.xlu0 %v1192
      %v1194 = vpop.xlane.xlu0 %1193
      %v1195 = vsel %vm918, %v1104, 0.0
      %1196 = vadd.xlane.f32.xlu0 %v1195
      %v1197 = vpop.xlane.xlu0 %1196
      %v1198 = vsel %vm918, %v1106, 0.0
      %1199 = vadd.xlane.f32.xlu0 %v1198
      %v1200 = vpop.xlane.xlu0 %1199
      %v1201 = vsel %vm918, %v1108, 0.0
      %1202 = vadd.xlane.f32.xlu0 %v1201
      %v1203 = vpop.xlane.xlu0 %1202
      %v1204 = vsel %vm918, %v1110, 0.0
      %1205 = vadd.xlane.f32.xlu0 %v1204
      %v1206 = vpop.xlane.xlu0 %1205
      %v1207 = vrcp.pop %v1113
      %v1208 = vrcp.pop %v1116
      %v1209 = vrcp.pop %v1119
      %v1210 = vrcp.pop %v1122
      %v1211 = vrcp.pop %v1125
      %v1212 = vrcp.pop %v1128
      %v1213 = vrcp.pop %v1131
      %v1214 = vrcp.pop %v1134
      %v1215 = vrcp.pop %v1137
      %v1216 = vrcp.pop %v1140
      %v1217 = vrcp.pop %v1143
      %v1218 = vrcp.pop %v1146
      %v1219 = vrcp.pop %v1149
      %v1220 = vrcp.pop %v1152
      %v1221 = vrcp.pop %v1155
      %v1222 = vrcp.pop %v1158
      %v1223 = vrcp.pop %v1161
      %v1224 = vrcp.pop %v1164
      %v1225 = vrcp.pop %v1167
      %v1226 = vrcp.pop %v1170
      %v1227 = vrcp.pop %v1173
      %v1228 = vrcp.pop %v1176
      %v1229 = vrcp.pop %v1179
      %v1230 = vrcp.pop %v1182
      %v1231 = vrcp.pop %v1185
      %v1232 = vrcp.pop %v1188
      %v1233 = vrcp.pop %v1191
      %v1234 = vrcp.pop %v1194
      %v1235 = vrcp.pop %v1197
      %v1236 = vrcp.pop %v1200
      %v1237 = vrcp.pop %v1203
      %v1238 = vrcp.pop %v1206
      %v1239 = vpack.c.bf16 %v1050, %v1048
      %v1240 = vpack.c.bf16 %v1054, %v1052
      %v1241 = vpack.c.bf16 %v1058, %v1056
      %v1242 = vpack.c.bf16 %v1062, %v1060
      %v1243 = vpack.c.bf16 %v1066, %v1064
      %v1244 = vpack.c.bf16 %v1070, %v1068
      %v1245 = vpack.c.bf16 %v1074, %v1072
      %v1246 = vpack.c.bf16 %v1078, %v1076
      %v1247 = vpack.c.bf16 %v1082, %v1080
      %v1248 = vpack.c.bf16 %v1086, %v1084
      %v1249 = vpack.c.bf16 %v1090, %v1088
      %v1250 = vpack.c.bf16 %v1094, %v1092
      %v1251 = vpack.c.bf16 %v1098, %v1096
      %v1252 = vpack.c.bf16 %v1102, %v1100
      %v1253 = vpack.c.bf16 %v1106, %v1104
      %v1254 = vpack.c.bf16 %v1110, %v1108
      %v1263 = vunpack.c.l.b16 %v369
      %v1264 = vunpack.c.l.b16 %v370
      %v1265 = vunpack.c.l.b16 %v371
      %v1266 = vunpack.c.l.b16 %v372
      %v1267 = vunpack.c.l.b16 %v373
      %v1268 = vunpack.c.l.b16 %v374
      %v1269 = vunpack.c.l.b16 %v375
      %v1270 = vunpack.c.l.b16 %v376
      %v1271 = vpack.c.b16 %v1264, %v1263
      %v1272 = vpack.c.b16 %v1266, %v1265
      %v1273 = vpack.c.b16 %v1268, %v1267
      %v1274 = vpack.c.b16 %v1270, %v1269
      %v1280 = vsel %vm918, %v1239, 0
      %v1283 = vsel %vm918, %v1240, 0
      %v1286 = vsel %vm918, %v1241, 0
      %v1289 = vsel %vm918, %v1242, 0
      %1291 = vmatprep.subr.bf16.mxu0 0
      %1292 = vmatpush1.bf16.msra.mxu0 0
      %1293 = vmatprep.subr.bf16.mxu0 0
      %1294 = vmatpush1.bf16.msra.mxu0 0
      %1295 = vmatprep.subr.bf16.mxu0 0
      %1296 = vmatpush1.bf16.msra.mxu0 0
      %1297 = vmatprep.subr.bf16.mxu0 0
      %1298 = vmatpush1.bf16.msra.mxu0 0
      %1299 = vmatprep.subr.bf16.mxu0 0
      %1300 = vmatpush1.bf16.msra.mxu0 %v1274
      %1301 = vmatprep.subr.bf16.mxu0 0
      %1302 = vmatpush1.bf16.msra.mxu0 %v1273
      %1303 = vmatprep.subr.bf16.mxu0 0
      %1304 = vmatpush1.bf16.msra.mxu0 %v1272
      %1305 = vmatprep.subr.bf16.mxu0 0
      %1306 = vmatpush1.bf16.msra.mxu0 %v1271
      %1307 = vmatprep.subr.bf16.mxu0 0
      %1308 = vmatpush2.bf16.msra.mxu0 0
      %1309 = vmatprep.subr.bf16.mxu0 0
      %1310 = vmatpush2.bf16.msra.mxu0 0
      %1311 = vmatprep.subr.bf16.mxu0 0
      %1312 = vmatpush2.bf16.msra.mxu0 0
      %1313 = vmatprep.subr.bf16.mxu0 0
      %1314 = vmatpush2.bf16.msra.mxu0 0
      %1315 = vmatprep.subr.bf16.mxu0 0
      %1316 = vmatpush2.bf16.msra.mxu0 0
      %1317 = vmatprep.subr.bf16.mxu0 0
      %1318 = vmatpush2.bf16.msra.mxu0 0
      %1319 = vmatprep.subr.bf16.mxu0 0
      %1320 = vmatpush2.bf16.msra.mxu0 0
      %1321 = vmatprep.subr.bf16.mxu0 0
      %1322 = vmatpush2.bf16.msra.mxu0 0
      %1323 = vmatprep.mubr.bf16.mxu0 0
      %1324 = vmatmul.mubr.bf16.gmra.mxu0 %v1280
      %v1325 = vpop.f32.mrf.mxu0
      %v1326 = vadd.f32 0.0, %v1325
      %v1327 = vpop.f32.mrf.mxu0
      %v1328 = vpop.f32.mrf.mxu0
      %v1329 = vadd.f32 0.0, %v1328
      %v1330 = vpop.f32.mrf.mxu0
      %1331 = vmatprep.mubr.bf16.mxu0 0
      %1332 = vmatmul.mubr.bf16.gmra.mxu0 %v1283
      %v1333 = vpop.f32.mrf.mxu0
      %v1334 = vadd.f32 0.0, %v1333
      %v1335 = vpop.f32.mrf.mxu0
      %v1336 = vpop.f32.mrf.mxu0
      %v1337 = vadd.f32 0.0, %v1336
      %v1338 = vpop.f32.mrf.mxu0
      %1339 = vmatprep.mubr.bf16.mxu0 0
      %1340 = vmatmul.mubr.bf16.gmra.mxu0 %v1286
      %v1341 = vpop.f32.mrf.mxu0
      %v1342 = vadd.f32 0.0, %v1341
      %v1343 = vpop.f32.mrf.mxu0
      %v1344 = vpop.f32.mrf.mxu0
      %v1345 = vadd.f32 0.0, %v1344
      %v1346 = vpop.f32.mrf.mxu0
      %1347 = vmatprep.mubr.bf16.mxu0 0
      %1348 = vmatmul.mubr.bf16.gmra.mxu0 %v1289
      %v1349 = vpop.f32.mrf.mxu0
      %v1350 = vadd.f32 0.0, %v1349
      %v1351 = vpop.f32.mrf.mxu0
      %v1352 = vpop.f32.mrf.mxu0
      %v1353 = vadd.f32 0.0, %v1352
      %v1354 = vpop.f32.mrf.mxu0
      %1355 = vdwg.mxu0
      %v1364 = vunpack.c.l.b16 %v377
      %v1365 = vunpack.c.l.b16 %v378
      %v1366 = vunpack.c.l.b16 %v379
      %v1367 = vunpack.c.l.b16 %v380
      %v1368 = vunpack.c.l.b16 %v381
      %v1369 = vunpack.c.l.b16 %v382
      %v1370 = vunpack.c.l.b16 %v383
      %v1371 = vunpack.c.l.b16 %v384
      %v1372 = vpack.c.b16 %v1365, %v1364
      %v1373 = vpack.c.b16 %v1367, %v1366
      %v1374 = vpack.c.b16 %v1369, %v1368
      %v1375 = vpack.c.b16 %v1371, %v1370
      %v1381 = vsel %vm918, %v1243, 0
      %v1384 = vsel %vm918, %v1244, 0
      %v1387 = vsel %vm918, %v1245, 0
      %v1390 = vsel %vm918, %v1246, 0
      %1392 = vmatprep.subr.bf16.mxu0 0
      %1393 = vmatpush1.bf16.msra.mxu0 0
      %1394 = vmatprep.subr.bf16.mxu0 0
      %1395 = vmatpush1.bf16.msra.mxu0 0
      %1396 = vmatprep.subr.bf16.mxu0 0
      %1397 = vmatpush1.bf16.msra.mxu0 0
      %1398 = vmatprep.subr.bf16.mxu0 0
      %1399 = vmatpush1.bf16.msra.mxu0 0
      %1400 = vmatprep.subr.bf16.mxu0 0
      %1401 = vmatpush1.bf16.msra.mxu0 %v1375
      %1402 = vmatprep.subr.bf16.mxu0 0
      %1403 = vmatpush1.bf16.msra.mxu0 %v1374
      %1404 = vmatprep.subr.bf16.mxu0 0
      %1405 = vmatpush1.bf16.msra.mxu0 %v1373
      %1406 = vmatprep.subr.bf16.mxu0 0
      %1407 = vmatpush1.bf16.msra.mxu0 %v1372
      %1408 = vmatprep.subr.bf16.mxu0 0
      %1409 = vmatpush2.bf16.msra.mxu0 0
      %1410 = vmatprep.subr.bf16.mxu0 0
      %1411 = vmatpush2.bf16.msra.mxu0 0
      %1412 = vmatprep.subr.bf16.mxu0 0
      %1413 = vmatpush2.bf16.msra.mxu0 0
      %1414 = vmatprep.subr.bf16.mxu0 0
      %1415 = vmatpush2.bf16.msra.mxu0 0
      %1416 = vmatprep.subr.bf16.mxu0 0
      %1417 = vmatpush2.bf16.msra.mxu0 0
      %1418 = vmatprep.subr.bf16.mxu0 0
      %1419 = vmatpush2.bf16.msra.mxu0 0
      %1420 = vmatprep.subr.bf16.mxu0 0
      %1421 = vmatpush2.bf16.msra.mxu0 0
      %1422 = vmatprep.subr.bf16.mxu0 0
      %1423 = vmatpush2.bf16.msra.mxu0 0
      %1424 = vmatprep.mubr.bf16.mxu0 0
      %1425 = vmatmul.mubr.bf16.gmra.mxu0 %v1381
      %v1426 = vpop.f32.mrf.mxu0
      %v1427 = vadd.f32 0.0, %v1426
      %v1428 = vpop.f32.mrf.mxu0
      %v1429 = vpop.f32.mrf.mxu0
      %v1430 = vadd.f32 0.0, %v1429
      %v1431 = vpop.f32.mrf.mxu0
      %1432 = vmatprep.mubr.bf16.mxu0 0
      %1433 = vmatmul.mubr.bf16.gmra.mxu0 %v1384
      %v1434 = vpop.f32.mrf.mxu0
      %v1435 = vadd.f32 0.0, %v1434
      %v1436 = vpop.f32.mrf.mxu0
      %v1437 = vpop.f32.mrf.mxu0
      %v1438 = vadd.f32 0.0, %v1437
      %v1439 = vpop.f32.mrf.mxu0
      %1440 = vmatprep.mubr.bf16.mxu0 0
      %1441 = vmatmul.mubr.bf16.gmra.mxu0 %v1387
      %v1442 = vpop.f32.mrf.mxu0
      %v1443 = vadd.f32 0.0, %v1442
      %v1444 = vpop.f32.mrf.mxu0
      %v1445 = vpop.f32.mrf.mxu0
      %v1446 = vadd.f32 0.0, %v1445
      %v1447 = vpop.f32.mrf.mxu0
      %1448 = vmatprep.mubr.bf16.mxu0 0
      %1449 = vmatmul.mubr.bf16.gmra.mxu0 %v1390
      %v1450 = vpop.f32.mrf.mxu0
      %v1451 = vadd.f32 0.0, %v1450
      %v1452 = vpop.f32.mrf.mxu0
      %v1453 = vpop.f32.mrf.mxu0
      %v1454 = vadd.f32 0.0, %v1453
      %v1455 = vpop.f32.mrf.mxu0
      %1456 = vdwg.mxu0
      %v1465 = vunpack.c.l.b16 %v385
      %v1466 = vunpack.c.l.b16 %v386
      %v1467 = vunpack.c.l.b16 %v387
      %v1468 = vunpack.c.l.b16 %v388
      %v1469 = vunpack.c.l.b16 %v389
      %v1470 = vunpack.c.l.b16 %v390
      %v1471 = vunpack.c.l.b16 %v391
      %v1472 = vunpack.c.l.b16 %v392
      %v1473 = vpack.c.b16 %v1466, %v1465
      %v1474 = vpack.c.b16 %v1468, %v1467
      %v1475 = vpack.c.b16 %v1470, %v1469
      %v1476 = vpack.c.b16 %v1472, %v1471
      %v1482 = vsel %vm918, %v1247, 0
      %v1485 = vsel %vm918, %v1248, 0
      %v1488 = vsel %vm918, %v1249, 0
      %v1491 = vsel %vm918, %v1250, 0
      %1493 = vmatprep.subr.bf16.mxu0 0
      %1494 = vmatpush1.bf16.msra.mxu0 0
      %1495 = vmatprep.subr.bf16.mxu0 0
      %1496 = vmatpush1.bf16.msra.mxu0 0
      %1497 = vmatprep.subr.bf16.mxu0 0
      %1498 = vmatpush1.bf16.msra.mxu0 0
      %1499 = vmatprep.subr.bf16.mxu0 0
      %1500 = vmatpush1.bf16.msra.mxu0 0
      %1501 = vmatprep.subr.bf16.mxu0 0
      %1502 = vmatpush1.bf16.msra.mxu0 %v1476
      %1503 = vmatprep.subr.bf16.mxu0 0
      %1504 = vmatpush1.bf16.msra.mxu0 %v1475
      %1505 = vmatprep.subr.bf16.mxu0 0
      %1506 = vmatpush1.bf16.msra.mxu0 %v1474
      %1507 = vmatprep.subr.bf16.mxu0 0
      %1508 = vmatpush1.bf16.msra.mxu0 %v1473
      %1509 = vmatprep.subr.bf16.mxu0 0
      %1510 = vmatpush2.bf16.msra.mxu0 0
      %1511 = vmatprep.subr.bf16.mxu0 0
      %1512 = vmatpush2.bf16.msra.mxu0 0
      %1513 = vmatprep.subr.bf16.mxu0 0
      %1514 = vmatpush2.bf16.msra.mxu0 0
      %1515 = vmatprep.subr.bf16.mxu0 0
      %1516 = vmatpush2.bf16.msra.mxu0 0
      %1517 = vmatprep.subr.bf16.mxu0 0
      %1518 = vmatpush2.bf16.msra.mxu0 0
      %1519 = vmatprep.subr.bf16.mxu0 0
      %1520 = vmatpush2.bf16.msra.mxu0 0
      %1521 = vmatprep.subr.bf16.mxu0 0
      %1522 = vmatpush2.bf16.msra.mxu0 0
      %1523 = vmatprep.subr.bf16.mxu0 0
      %1524 = vmatpush2.bf16.msra.mxu0 0
      %1525 = vmatprep.mubr.bf16.mxu0 0
      %1526 = vmatmul.mubr.bf16.gmra.mxu0 %v1482
      %v1527 = vpop.f32.mrf.mxu0
      %v1528 = vadd.f32 0.0, %v1527
      %v1529 = vpop.f32.mrf.mxu0
      %v1530 = vpop.f32.mrf.mxu0
      %v1531 = vadd.f32 0.0, %v1530
      %v1532 = vpop.f32.mrf.mxu0
      %1533 = vmatprep.mubr.bf16.mxu0 0
      %1534 = vmatmul.mubr.bf16.gmra.mxu0 %v1485
      %v1535 = vpop.f32.mrf.mxu0
      %v1536 = vadd.f32 0.0, %v1535
      %v1537 = vpop.f32.mrf.mxu0
      %v1538 = vpop.f32.mrf.mxu0
      %v1539 = vadd.f32 0.0, %v1538
      %v1540 = vpop.f32.mrf.mxu0
      %1541 = vmatprep.mubr.bf16.mxu0 0
      %1542 = vmatmul.mubr.bf16.gmra.mxu0 %v1488
      %v1543 = vpop.f32.mrf.mxu0
      %v1544 = vadd.f32 0.0, %v1543
      %v1545 = vpop.f32.mrf.mxu0
      %v1546 = vpop.f32.mrf.mxu0
      %v1547 = vadd.f32 0.0, %v1546
      %v1548 = vpop.f32.mrf.mxu0
      %1549 = vmatprep.mubr.bf16.mxu0 0
      %1550 = vmatmul.mubr.bf16.gmra.mxu0 %v1491
      %v1551 = vpop.f32.mrf.mxu0
      %v1552 = vadd.f32 0.0, %v1551
      %v1553 = vpop.f32.mrf.mxu0
      %v1554 = vpop.f32.mrf.mxu0
      %v1555 = vadd.f32 0.0, %v1554
      %v1556 = vpop.f32.mrf.mxu0
      %1557 = vdwg.mxu0
      %v1566 = vunpack.c.l.b16 %v393
      %v1567 = vunpack.c.l.b16 %v394
      %v1568 = vunpack.c.l.b16 %v395
      %v1569 = vunpack.c.l.b16 %v396
      %v1570 = vunpack.c.l.b16 %v397
      %v1571 = vunpack.c.l.b16 %v398
      %v1572 = vunpack.c.l.b16 %v399
      %v1573 = vunpack.c.l.b16 %v400
      %v1574 = vpack.c.b16 %v1567, %v1566
      %v1575 = vpack.c.b16 %v1569, %v1568
      %v1576 = vpack.c.b16 %v1571, %v1570
      %v1577 = vpack.c.b16 %v1573, %v1572
      %v1583 = vsel %vm918, %v1251, 0
      %v1586 = vsel %vm918, %v1252, 0
      %v1589 = vsel %vm918, %v1253, 0
      %v1592 = vsel %vm918, %v1254, 0
      %1594 = vmatprep.subr.bf16.mxu0 0
      %1595 = vmatpush1.bf16.msra.mxu0 0
      %1596 = vmatprep.subr.bf16.mxu0 0
      %1597 = vmatpush1.bf16.msra.mxu0 0
      %1598 = vmatprep.subr.bf16.mxu0 0
      %1599 = vmatpush1.bf16.msra.mxu0 0
      %1600 = vmatprep.subr.bf16.mxu0 0
      %1601 = vmatpush1.bf16.msra.mxu0 0
      %1602 = vmatprep.subr.bf16.mxu0 0
      %1603 = vmatpush1.bf16.msra.mxu0 %v1577
      %1604 = vmatprep.subr.bf16.mxu0 0
      %1605 = vmatpush1.bf16.msra.mxu0 %v1576
      %1606 = vmatprep.subr.bf16.mxu0 0
      %1607 = vmatpush1.bf16.msra.mxu0 %v1575
      %1608 = vmatprep.subr.bf16.mxu0 0
      %1609 = vmatpush1.bf16.msra.mxu0 %v1574
      %1610 = vmatprep.subr.bf16.mxu0 0
      %1611 = vmatpush2.bf16.msra.mxu0 0
      %1612 = vmatprep.subr.bf16.mxu0 0
      %1613 = vmatpush2.bf16.msra.mxu0 0
      %1614 = vmatprep.subr.bf16.mxu0 0
      %1615 = vmatpush2.bf16.msra.mxu0 0
      %1616 = vmatprep.subr.bf16.mxu0 0
      %1617 = vmatpush2.bf16.msra.mxu0 0
      %1618 = vmatprep.subr.bf16.mxu0 0
      %1619 = vmatpush2.bf16.msra.mxu0 0
      %1620 = vmatprep.subr.bf16.mxu0 0
      %1621 = vmatpush2.bf16.msra.mxu0 0
      %1622 = vmatprep.subr.bf16.mxu0 0
      %1623 = vmatpush2.bf16.msra.mxu0 0
      %1624 = vmatprep.subr.bf16.mxu0 0
      %1625 = vmatpush2.bf16.msra.mxu0 0
      %1626 = vmatprep.mubr.bf16.mxu0 0
      %1627 = vmatmul.mubr.bf16.gmra.mxu0 %v1583
      %v1628 = vpop.f32.mrf.mxu0
      %v1629 = vadd.f32 0.0, %v1628
      %v1630 = vpop.f32.mrf.mxu0
      %v1631 = vpop.f32.mrf.mxu0
      %v1632 = vadd.f32 0.0, %v1631
      %v1633 = vpop.f32.mrf.mxu0
      %1634 = vmatprep.mubr.bf16.mxu0 0
      %1635 = vmatmul.mubr.bf16.gmra.mxu0 %v1586
      %v1636 = vpop.f32.mrf.mxu0
      %v1637 = vadd.f32 0.0, %v1636
      %v1638 = vpop.f32.mrf.mxu0
      %v1639 = vpop.f32.mrf.mxu0
      %v1640 = vadd.f32 0.0, %v1639
      %v1641 = vpop.f32.mrf.mxu0
      %1642 = vmatprep.mubr.bf16.mxu0 0
      %1643 = vmatmul.mubr.bf16.gmra.mxu0 %v1589
      %v1644 = vpop.f32.mrf.mxu0
      %v1645 = vadd.f32 0.0, %v1644
      %v1646 = vpop.f32.mrf.mxu0
      %v1647 = vpop.f32.mrf.mxu0
      %v1648 = vadd.f32 0.0, %v1647
      %v1649 = vpop.f32.mrf.mxu0
      %1650 = vmatprep.mubr.bf16.mxu0 0
      %1651 = vmatmul.mubr.bf16.gmra.mxu0 %v1592
      %v1652 = vpop.f32.mrf.mxu0
      %v1653 = vadd.f32 0.0, %v1652
      %v1654 = vpop.f32.mrf.mxu0
      %v1655 = vpop.f32.mrf.mxu0
      %v1656 = vadd.f32 0.0, %v1655
      %v1657 = vpop.f32.mrf.mxu0
      %1658 = vdwg.mxu0
      %v1659 = vmul.f32 %v1326, %v1207
      %v1660 = vmul.f32 %v1329, %v1208
      %v1661 = vmul.f32 %v1334, %v1209
      %v1662 = vmul.f32 %v1337, %v1210
      %v1663 = vmul.f32 %v1342, %v1211
      %v1664 = vmul.f32 %v1345, %v1212
      %v1665 = vmul.f32 %v1350, %v1213
      %v1666 = vmul.f32 %v1353, %v1214
      %v1667 = vmul.f32 %v1427, %v1215
      %v1668 = vmul.f32 %v1430, %v1216
      %v1669 = vmul.f32 %v1435, %v1217
      %v1670 = vmul.f32 %v1438, %v1218
      %v1671 = vmul.f32 %v1443, %v1219
      %v1672 = vmul.f32 %v1446, %v1220
      %v1673 = vmul.f32 %v1451, %v1221
      %v1674 = vmul.f32 %v1454, %v1222
      %v1675 = vmul.f32 %v1528, %v1223
      %v1676 = vmul.f32 %v1531, %v1224
      %v1677 = vmul.f32 %v1536, %v1225
      %v1678 = vmul.f32 %v1539, %v1226
      %v1679 = vmul.f32 %v1544, %v1227
      %v1680 = vmul.f32 %v1547, %v1228
      %v1681 = vmul.f32 %v1552, %v1229
      %v1682 = vmul.f32 %v1555, %v1230
      %v1683 = vmul.f32 %v1629, %v1231
      %v1684 = vmul.f32 %v1632, %v1232
      %v1685 = vmul.f32 %v1637, %v1233
      %v1686 = vmul.f32 %v1640, %v1234
      %v1687 = vmul.f32 %v1645, %v1235
      %v1688 = vmul.f32 %v1648, %v1236
      %v1689 = vmul.f32 %v1653, %v1237
      %v1690 = vmul.f32 %v1656, %v1238
      %v1691 = vpack.c.bf16 %v1660, %v1659
      %v1692 = vpack.c.bf16 %v1662, %v1661
      %v1693 = vpack.c.bf16 %v1664, %v1663
      %v1694 = vpack.c.bf16 %v1666, %v1665
      %v1699 = vunpack.c.l.b16 %v1691
      %v1700 = vunpack.c.h.b16 %v1691
      %v1701 = vunpack.c.l.b16 %v1692
      %v1702 = vunpack.c.h.b16 %v1692
      %v1703 = vunpack.c.l.b16 %v1693
      %v1704 = vunpack.c.h.b16 %v1693
      %v1705 = vunpack.c.l.b16 %v1694
      %v1706 = vunpack.c.h.b16 %v1694
      %v1707 = vpack.c.b16 %v1699, %v1699
      %v1708 = vpack.c.b16 %v1700, %v1700
      %v1709 = vpack.c.b16 %v1701, %v1701
      %v1710 = vpack.c.b16 %v1702, %v1702
      %v1711 = vpack.c.b16 %v1703, %v1703
      %v1712 = vpack.c.b16 %v1704, %v1704
      %v1713 = vpack.c.b16 %v1705, %v1705
      %v1714 = vpack.c.b16 %v1706, %v1706
      %vm1723 = vcmask 60416
      %1724 = vst.msk [vmem:[#allocation2] sm:$0xf] %vm1723, %v1707
      %1725 = vst.msk [vmem:[#allocation2 + $0x4] sm:$0xf] %vm1723, %v1708
      %1726 = vst.msk [vmem:[#allocation2 + $0x8] sm:$0xf] %vm1723, %v1709
      %1727 = vst.msk [vmem:[#allocation2 + $0xc] sm:$0xf] %vm1723, %v1710
      %1728 = vst.msk [vmem:[#allocation2 + $0x10] sm:$0xf] %vm1723, %v1711
      %1729 = vst.msk [vmem:[#allocation2 + $0x14] sm:$0xf] %vm1723, %v1712
      %1730 = vst.msk [vmem:[#allocation2 + $0x18] sm:$0xf] %vm1723, %v1713
      %1731 = vst.msk [vmem:[#allocation2 + $0x1c] sm:$0xf] %vm1723, %v1714
      %v1732 = vpack.c.bf16 %v1668, %v1667
      %v1733 = vpack.c.bf16 %v1670, %v1669
      %v1734 = vpack.c.bf16 %v1672, %v1671
      %v1735 = vpack.c.bf16 %v1674, %v1673
      %v1740 = vunpack.c.l.b16 %v1732
      %v1741 = vunpack.c.h.b16 %v1732
      %v1742 = vunpack.c.l.b16 %v1733
      %v1743 = vunpack.c.h.b16 %v1733
      %v1744 = vunpack.c.l.b16 %v1734
      %v1745 = vunpack.c.h.b16 %v1734
      %v1746 = vunpack.c.l.b16 %v1735
      %v1747 = vunpack.c.h.b16 %v1735
      %v1748 = vpack.c.b16 %v1740, %v1740
      %v1749 = vpack.c.b16 %v1741, %v1741
      %v1750 = vpack.c.b16 %v1742, %v1742
      %v1751 = vpack.c.b16 %v1743, %v1743
      %v1752 = vpack.c.b16 %v1744, %v1744
      %v1753 = vpack.c.b16 %v1745, %v1745
      %v1754 = vpack.c.b16 %v1746, %v1746
      %v1755 = vpack.c.b16 %v1747, %v1747
      %1756 = vrot.lane.b32.xlu0 %v1748, 8
      %v1757 = vpop.permute.xlu0 %1756
      %1758 = vrot.lane.b32.xlu0 %v1749, 8
      %v1759 = vpop.permute.xlu0 %1758
      %1760 = vrot.lane.b32.xlu0 %v1750, 8
      %v1761 = vpop.permute.xlu0 %1760
      %1762 = vrot.lane.b32.xlu0 %v1751, 8
      %v1763 = vpop.permute.xlu0 %1762
      %1764 = vrot.lane.b32.xlu0 %v1752, 8
      %v1765 = vpop.permute.xlu0 %1764
      %1766 = vrot.lane.b32.xlu0 %v1753, 8
      %v1767 = vpop.permute.xlu0 %1766
      %1768 = vrot.lane.b32.xlu0 %v1754, 8
      %v1769 = vpop.permute.xlu0 %1768
      %1770 = vrot.lane.b32.xlu0 %v1755, 8
      %v1771 = vpop.permute.xlu0 %1770
      %vm1780 = vcmask 126016
      %1781 = vst.msk [vmem:[#allocation2] sm:$0xf] %vm1780, %v1757
      %1782 = vst.msk [vmem:[#allocation2 + $0x4] sm:$0xf] %vm1780, %v1759
      %1783 = vst.msk [vmem:[#allocation2 + $0x8] sm:$0xf] %vm1780, %v1761
      %1784 = vst.msk [vmem:[#allocation2 + $0xc] sm:$0xf] %vm1780, %v1763
      %1785 = vst.msk [vmem:[#allocation2 + $0x10] sm:$0xf] %vm1780, %v1765
      %1786 = vst.msk [vmem:[#allocation2 + $0x14] sm:$0xf] %vm1780, %v1767
      %1787 = vst.msk [vmem:[#allocation2 + $0x18] sm:$0xf] %vm1780, %v1769
      %1788 = vst.msk [vmem:[#allocation2 + $0x1c] sm:$0xf] %vm1780, %v1771
      %v1789 = vpack.c.bf16 %v1676, %v1675
      %v1790 = vpack.c.bf16 %v1678, %v1677
      %v1791 = vpack.c.bf16 %v1680, %v1679
      %v1792 = vpack.c.bf16 %v1682, %v1681
      %v1797 = vunpack.c.l.b16 %v1789
      %v1798 = vunpack.c.h.b16 %v1789
      %v1799 = vunpack.c.l.b16 %v1790
      %v1800 = vunpack.c.h.b16 %v1790
      %v1801 = vunpack.c.l.b16 %v1791
      %v1802 = vunpack.c.h.b16 %v1791
      %v1803 = vunpack.c.l.b16 %v1792
      %v1804 = vunpack.c.h.b16 %v1792
      %v1805 = vpack.c.b16 %v1797, %v1797
      %v1806 = vpack.c.b16 %v1798, %v1798
      %v1807 = vpack.c.b16 %v1799, %v1799
      %v1808 = vpack.c.b16 %v1800, %v1800
      %v1809 = vpack.c.b16 %v1801, %v1801
      %v1810 = vpack.c.b16 %v1802, %v1802
      %v1811 = vpack.c.b16 %v1803, %v1803
      %v1812 = vpack.c.b16 %v1804, %v1804
      %1813 = vrot.lane.b32.xlu0 %v1805, 16
      %v1814 = vpop.permute.xlu0 %1813
      %1815 = vrot.lane.b32.xlu0 %v1806, 16
      %v1816 = vpop.permute.xlu0 %1815
      %1817 = vrot.lane.b32.xlu0 %v1807, 16
      %v1818 = vpop.permute.xlu0 %1817
      %1819 = vrot.lane.b32.xlu0 %v1808, 16
      %v1820 = vpop.permute.xlu0 %1819
      %1821 = vrot.lane.b32.xlu0 %v1809, 16
      %v1822 = vpop.permute.xlu0 %1821
      %1823 = vrot.lane.b32.xlu0 %v1810, 16
      %v1824 = vpop.permute.xlu0 %1823
      %1825 = vrot.lane.b32.xlu0 %v1811, 16
      %v1826 = vpop.permute.xlu0 %1825
      %1827 = vrot.lane.b32.xlu0 %v1812, 16
      %v1828 = vpop.permute.xlu0 %1827
      %vm1837 = vcmask 191616
      %1838 = vst.msk [vmem:[#allocation2] sm:$0xf] %vm1837, %v1814
      %1839 = vst.msk [vmem:[#allocation2 + $0x4] sm:$0xf] %vm1837, %v1816
      %1840 = vst.msk [vmem:[#allocation2 + $0x8] sm:$0xf] %vm1837, %v1818
      %1841 = vst.msk [vmem:[#allocation2 + $0xc] sm:$0xf] %vm1837, %v1820
      %1842 = vst.msk [vmem:[#allocation2 + $0x10] sm:$0xf] %vm1837, %v1822
      %1843 = vst.msk [vmem:[#allocation2 + $0x14] sm:$0xf] %vm1837, %v1824
      %1844 = vst.msk [vmem:[#allocation2 + $0x18] sm:$0xf] %vm1837, %v1826
      %1845 = vst.msk [vmem:[#allocation2 + $0x1c] sm:$0xf] %vm1837, %v1828
      %v1846 = vpack.c.bf16 %v1684, %v1683
      %v1847 = vpack.c.bf16 %v1686, %v1685
      %v1848 = vpack.c.bf16 %v1688, %v1687
      %v1849 = vpack.c.bf16 %v1690, %v1689
      %v1854 = vunpack.c.l.b16 %v1846
      %v1855 = vunpack.c.h.b16 %v1846
      %v1856 = vunpack.c.l.b16 %v1847
      %v1857 = vunpack.c.h.b16 %v1847
      %v1858 = vunpack.c.l.b16 %v1848
      %v1859 = vunpack.c.h.b16 %v1848
      %v1860 = vunpack.c.l.b16 %v1849
      %v1861 = vunpack.c.h.b16 %v1849
      %v1862 = vpack.c.b16 %v1854, %v1854
      %v1863 = vpack.c.b16 %v1855, %v1855
      %v1864 = vpack.c.b16 %v1856, %v1856
      %v1865 = vpack.c.b16 %v1857, %v1857
      %v1866 = vpack.c.b16 %v1858, %v1858
      %v1867 = vpack.c.b16 %v1859, %v1859
      %v1868 = vpack.c.b16 %v1860, %v1860
      %v1869 = vpack.c.b16 %v1861, %v1861
      %1870 = vrot.lane.b32.xlu0 %v1862, 24
      %v1871 = vpop.permute.xlu0 %1870
      %1872 = vrot.lane.b32.xlu0 %v1863, 24
      %v1873 = vpop.permute.xlu0 %1872
      %1874 = vrot.lane.b32.xlu0 %v1864, 24
      %v1875 = vpop.permute.xlu0 %1874
      %1876 = vrot.lane.b32.xlu0 %v1865, 24
      %v1877 = vpop.permute.xlu0 %1876
      %1878 = vrot.lane.b32.xlu0 %v1866, 24
      %v1879 = vpop.permute.xlu0 %1878
      %1880 = vrot.lane.b32.xlu0 %v1867, 24
      %v1881 = vpop.permute.xlu0 %1880
      %1882 = vrot.lane.b32.xlu0 %v1868, 24
      %v1883 = vpop.permute.xlu0 %1882
      %1884 = vrot.lane.b32.xlu0 %v1869, 24
      %v1885 = vpop.permute.xlu0 %1884
      %vm1894 = vcmask 257216
      %1895 = vst.msk [vmem:[#allocation2] sm:$0xf] %vm1894, %v1871
      %1896 = vst.msk [vmem:[#allocation2 + $0x4] sm:$0xf] %vm1894, %v1873
      %1897 = vst.msk [vmem:[#allocation2 + $0x8] sm:$0xf] %vm1894, %v1875
      %1898 = vst.msk [vmem:[#allocation2 + $0xc] sm:$0xf] %vm1894, %v1877
      %1899 = vst.msk [vmem:[#allocation2 + $0x10] sm:$0xf] %vm1894, %v1879
      %1900 = vst.msk [vmem:[#allocation2 + $0x14] sm:$0xf] %vm1894, %v1881
      %1901 = vst.msk [vmem:[#allocation2 + $0x18] sm:$0xf] %vm1894, %v1883
      %1902 = vst.msk [vmem:[#allocation2 + $0x1c] sm:$0xf] %vm1894, %v1885
      %v1903 = vld [vmem:[#allocation2] sm:$0xf]
      %v1904 = vld [vmem:[#allocation2 + $0x4] sm:$0xf]
      %v1905 = vld [vmem:[#allocation2 + $0x8] sm:$0xf]
      %v1906 = vld [vmem:[#allocation2 + $0xc] sm:$0xf]
      %v1907 = vld [vmem:[#allocation2 + $0x10] sm:$0xf]
      %v1908 = vld [vmem:[#allocation2 + $0x14] sm:$0xf]
      %v1909 = vld [vmem:[#allocation2 + $0x18] sm:$0xf]
      %v1910 = vld [vmem:[#allocation2 + $0x1c] sm:$0xf]
      %v1911 = vld [vmem:[%s3] sm:$0xf]
      %v1912 = vld [vmem:[%s3 + $0x4] sm:$0xf]
      %v1913 = vld [vmem:[%s3 + $0x8] sm:$0xf]
      %v1914 = vld [vmem:[%s3 + $0xc] sm:$0xf]
      %v1915 = vld [vmem:[%s4] sm:$0x1]
      %v1917 = vlaneseq
      %v1918 = vshrl.u32 %v1917, 7
      %v1919 = vsub.s32 0, %v1918
      %v1920 = vrot.slane %v1915, %v1919
      %v1930 = vunpack.c.l.b16 %v1903
      %v1931 = vunpack.c.l.b16 %v1904
      %v1932 = vunpack.c.l.b16 %v1905
      %v1933 = vunpack.c.l.b16 %v1906
      %v1934 = vunpack.c.l.b16 %v1907
      %v1935 = vunpack.c.l.b16 %v1908
      %v1936 = vunpack.c.l.b16 %v1909
      %v1937 = vunpack.c.l.b16 %v1910
      %v1938 = vpack.c.b16 %v1931, %v1930
      %v1939 = vpack.c.b16 %v1933, %v1932
      %v1940 = vpack.c.b16 %v1935, %v1934
      %v1941 = vpack.c.b16 %v1937, %v1936
      %v1946 = vunpack.c.l.b16 %v1911
      %v1947 = vunpack.c.l.b16 %v1912
      %v1948 = vunpack.c.l.b16 %v1913
      %v1949 = vunpack.c.l.b16 %v1914
      %v1950 = vpack.c.b16 %v1947, %v1946
      %v1951 = vpack.c.b16 %v1949, %v1948
      %vm1954 = vcmask 261120
      %v1956 = vsel %vm1954, %v1938, 0
      %v1959 = vsel %vm1954, %v1939, 0
      %v1962 = vsel %vm1954, %v1940, 0
      %v1965 = vsel %vm1954, %v1941, 0
      %1967 = vmatprep.subr.bf16.mxu0 0
      %1968 = vmatpush1.bf16.msra.mxu0 0
      %1969 = vmatprep.subr.bf16.mxu0 0
      %1970 = vmatpush1.bf16.msra.mxu0 0
      %1971 = vmatprep.subr.bf16.mxu0 0
      %1972 = vmatpush1.bf16.msra.mxu0 0
      %1973 = vmatprep.subr.bf16.mxu0 0
      %1974 = vmatpush1.bf16.msra.mxu0 0
      %1975 = vmatprep.subr.bf16.mxu0 0
      %1976 = vmatpush1.bf16.msra.mxu0 0
      %1977 = vmatprep.subr.bf16.mxu0 0
      %1978 = vmatpush1.bf16.msra.mxu0 0
      %1979 = vmatprep.subr.bf16.mxu0 0
      %1980 = vmatpush1.bf16.msra.mxu0 %v1951
      %1981 = vmatprep.subr.bf16.mxu0 0
      %1982 = vmatpush1.bf16.msra.mxu0 %v1950
      %1983 = vmatprep.subr.bf16.mxu0 0
      %1984 = vmatpush2.bf16.msra.mxu0 0
      %1985 = vmatprep.subr.bf16.mxu0 0
      %1986 = vmatpush2.bf16.msra.mxu0 0
      %1987 = vmatprep.subr.bf16.mxu0 0
      %1988 = vmatpush2.bf16.msra.mxu0 0
      %1989 = vmatprep.subr.bf16.mxu0 0
      %1990 = vmatpush2.bf16.msra.mxu0 0
      %1991 = vmatprep.subr.bf16.mxu0 0
      %1992 = vmatpush2.bf16.msra.mxu0 0
      %1993 = vmatprep.subr.bf16.mxu0 0
      %1994 = vmatpush2.bf16.msra.mxu0 0
      %1995 = vmatprep.subr.bf16.mxu0 0
      %1996 = vmatpush2.bf16.msra.mxu0 0
      %1997 = vmatprep.subr.bf16.mxu0 0
      %1998 = vmatpush2.bf16.msra.mxu0 0
      %1999 = vmatprep.mubr.bf16.mxu0 0
      %2000 = vmatmul.mubr.bf16.gmra.mxu0 %v1956
      %v2001 = vpop.f32.mrf.mxu0
      %v2002 = vadd.f32 %v1920, %v2001
      %v2003 = vpop.f32.mrf.mxu0
      %v2004 = vpop.f32.mrf.mxu0
      %v2005 = vadd.f32 %v1920, %v2004
      %v2006 = vpop.f32.mrf.mxu0
      %2007 = vmatprep.mubr.bf16.mxu0 0
      %2008 = vmatmul.mubr.bf16.gmra.mxu0 %v1959
      %v2009 = vpop.f32.mrf.mxu0
      %v2010 = vadd.f32 %v1920, %v2009
      %v2011 = vpop.f32.mrf.mxu0
      %v2012 = vpop.f32.mrf.mxu0
      %v2013 = vadd.f32 %v1920, %v2012
      %v2014 = vpop.f32.mrf.mxu0
      %2015 = vmatprep.mubr.bf16.mxu0 0
      %2016 = vmatmul.mubr.bf16.gmra.mxu0 %v1962
      %v2017 = vpop.f32.mrf.mxu0
      %v2018 = vadd.f32 %v1920, %v2017
      %v2019 = vpop.f32.mrf.mxu0
      %v2020 = vpop.f32.mrf.mxu0
      %v2021 = vadd.f32 %v1920, %v2020
      %v2022 = vpop.f32.mrf.mxu0
      %2023 = vmatprep.mubr.bf16.mxu0 0
      %2024 = vmatmul.mubr.bf16.gmra.mxu0 %v1965
      %v2025 = vpop.f32.mrf.mxu0
      %v2026 = vadd.f32 %v1920, %v2025
      %v2027 = vpop.f32.mrf.mxu0
      %v2028 = vpop.f32.mrf.mxu0
      %v2029 = vadd.f32 %v1920, %v2028
      %v2030 = vpop.f32.mrf.mxu0
      %2031 = vdwg.mxu0
      %2032 = vst.msk [vmem:[%s302] sm:$0xff] %vm1954, %v2002
      %2033 = vst.msk [vmem:[%s302 + $0x8] sm:$0xff] %vm1954, %v2005
      %2034 = vst.msk [vmem:[%s302 + $0x10] sm:$0xff] %vm1954, %v2010
      %2035 = vst.msk [vmem:[%s302 + $0x18] sm:$0xff] %vm1954, %v2013
      %2036 = vst.msk [vmem:[%s302 + $0x20] sm:$0xff] %vm1954, %v2018
      %2037 = vst.msk [vmem:[%s302 + $0x28] sm:$0xff] %vm1954, %v2021
      %2038 = vst.msk [vmem:[%s302 + $0x30] sm:$0xff] %vm1954, %v2026
      %2039 = vst.msk [vmem:[%s302 + $0x38] sm:$0xff] %vm1954, %v2029
      %s2040 = smul.u32 8, %s21
      %p2041 = scmp.lt.s32.totalorder %s20, 1
      %s2042 = scalar_select %p2041, %s20, 1
      %p2043 = scmp.lt.s32.totalorder %s2040, 7
      %s2044 = scalar_select %p2043, %s2040, 7
      %s2045 = smul.addr %s2042, 8
      %s2046 = sadd.s32 %s2044, %s2045
      %s2047 = smul.addr %s2046, 8
      %s2048 = scalar_lea.vmem %s5, %s2047
      // Predicated region
      $region41: #{tpu_custom_call.1} parent=39 // pred_check
        %p2049 = pneg %p170
      $region42: #{tpu_custom_call.1} parent=39 // pred_check_branch
        %2051 = sbr.rel (%p2049) target = $region44
      $region43: #{tpu_custom_call.1} parent=39 // pred_region
        %s2052 = smul.u32 8, %s21
      $region44: #{tpu_custom_call.1} parent=39 // pred_fallthru
        _
    $region40: #{tpu_custom_call.1} parent=5 // pred_fallthru
      _
    %p2053 = scmp.le.s32.totalorder 2, %s11
    // Predicated region
    $region45: #{tpu_custom_call.1} parent=5 // pred_check
      %p2054 = pneg %p2053
    $region46: #{tpu_custom_call.1} parent=5 // pred_check_branch
      %2056 = sbr.rel (%p2054) target = $region48
    $region47: #{tpu_custom_call.1} parent=5 // pred_region
      %s2057 = ssub.s32 %s11, 2
      // Predicated region
      $region49: #{tpu_custom_call.1} parent=47 // pred_check
        %p2058 = pneg %p176
      $region50: #{tpu_custom_call.1} parent=47 // pred_check_branch
        %2060 = sbr.rel (%p2058) target = $region52
      $region51: #{tpu_custom_call.1} parent=47 // pred_region
        %s2061 = smul.u32 8, %s23
        %p2062 = scmp.lt.s32.totalorder %s22, 1
        %s2063 = scalar_select %p2062, %s22, 1
        %p2064 = scmp.lt.s32.totalorder %s2061, 7
        %s2065 = scalar_select %p2064, %s2061, 7
        %s2066 = smul.addr %s2063, 8
        %s2067 = sadd.s32 %s2065, %s2066
        %s2068 = smul.addr %s2067, 8
        %s2069 = scalar_lea.vmem %s5, %s2068
      $region52: #{tpu_custom_call.1} parent=47 // pred_fallthru
        _
    $region48: #{tpu_custom_call.1} parent=5 // pred_fallthru
      _
  $region6: #{tpu_custom_call.1} parent=0 // loop_footer
    %s15 = sadd.s32 1, %s11
  $region7: #{tpu_custom_call.1} parent=0 // loop_footer_branch
    %10 = sbr.rel target = $region3
  $region8: #{tpu_custom_call.1} parent=0 // loop_exit
    _

</llo_original>
